<compile_context>
chip_gen: v7x
topology: tpu7x:2x2x1
jax: 0.10.0
libtpu: 0.0.40
codegen_flags: <defaults>
</compile_context>

<pallas_src>
import jax
import jax.numpy as jnp
import numpy as np
from jax import lax
from jax.experimental import pallas as pl
from jax.experimental.pallas import tpu as pltpu


def _round_up(x, m):
    return (x + m - 1) // m * m


def _hgcn_ui_kernel(hg_ref, item0_hbm, user0_hbm, wn_ref, we_ref, b_ref,
                    node_out_ref, edge_out_ref,
                    item_cur, user_cur):
    layer = pl.program_id(0)

    @pl.when(layer == 0)
    def _init():
        # DMA initial embeddings straight into the layer-sum accumulators
        # (the sums start with the input embeddings), then derive the carries.
        pltpu.sync_copy(item0_hbm, node_out_ref)     # f32 [Ip, Dp]
        pltpu.sync_copy(user0_hbm, edge_out_ref)     # f32 [Up, Dp]
        item_cur[...] = node_out_ref[...].astype(jnp.bfloat16)
        user_cur[...] = edge_out_ref[...]

    hg = hg_ref[...]                                 # [Up, Ip]  bf16 (0/1 exact)
    user_emb = user_cur[...]                         # [Up, Dp]  f32

    # node_msg = hyper_graph @ item_emb  -> [Up, Dp]; bf16 MXU, f32 accumulation.
    node_msg = jnp.dot(hg, item_cur[...], preferred_element_type=jnp.float32)

    # edge_node_element = node_msg * user_emb (f32 VPU)
    edge_elem = node_msg * user_emb

    # msg = Linear(2*dim -> dim)(cat([node_msg, edge_elem], 1))
    #     = node_msg @ W_node + edge_elem @ W_edge + bias
    # Two native bf16 matmuls, f32 accumulation; no concat buffer.
    bias = b_ref[pl.ds(layer, 1), :]                 # [1, Dp] f32, resident
    msg = (jnp.dot(node_msg.astype(jnp.bfloat16), wn_ref[0],
                   preferred_element_type=jnp.float32)
           + jnp.dot(edge_elem.astype(jnp.bfloat16), we_ref[0],
                     preferred_element_type=jnp.float32)
           + bias)

    # norm_emb = hyper_graph.T @ msg -> [Ip, Dp]; contraction over hg's first
    # axis (transposed-LHS MXU matmul, no materialized hg^T).
    norm_emb = lax.dot_general(
        hg, msg.astype(jnp.bfloat16),
        dimension_numbers=(((0,), (0,)), ((), ())),
        preferred_element_type=jnp.float32)

    # carry state (item carry in bf16) & accumulate layer sums into the outputs
    item_cur[...] = norm_emb.astype(jnp.bfloat16)
    user_cur[...] = msg
    node_out_ref[...] += norm_emb
    edge_out_ref[...] += msg


def _vmem_cap_bytes():
    try:
        return int(pltpu.get_tpu_info().vmem_capacity_bytes)
    except Exception:
        return 64 * 1024 * 1024   # conservative (v7x per-TC physical VMEM)


def hgcn_ui_forward(hyper_graph, user_emb, item_emb, w_stack, b_stack):
    """Returns (final_node_emb [n_items, dim], final_edge_emb [n_users, dim]).

    w_stack: [layers, 2*dim, dim]  (transpose of the torch Linear weight)
    b_stack: [layers, dim]
    """
    n_users, n_items = hyper_graph.shape
    dim = item_emb.shape[1]
    layers = w_stack.shape[0]

    # --- pad to lane-dense / MXU-friendly shapes -----------------------------
    dp = _round_up(dim, 128)        # lane-dense embedding dim
    up = _round_up(n_users, 128)    # K dim of hg^T matmul; sublane axis of hg
    ip = _round_up(n_items, 128)    # lane axis of hg; K dim of first matmul

    hg_p = jnp.zeros((up, ip), jnp.bfloat16)
    hg_p = hg_p.at[:n_users, :n_items].set(hyper_graph.astype(jnp.bfloat16))
    ue_p = jnp.zeros((up, dp), jnp.float32).at[:n_users, :dim].set(user_emb)
    ie_p = jnp.zeros((ip, dp), jnp.float32).at[:n_items, :dim].set(item_emb)

    # Split fused weight into the node/edge halves; bf16 (MXU-native), padded.
    wn_p = jnp.zeros((layers, dp, dp), jnp.bfloat16)
    wn_p = wn_p.at[:, :dim, :dim].set(w_stack[:, :dim, :].astype(jnp.bfloat16))
    we_p = jnp.zeros((layers, dp, dp), jnp.bfloat16)
    we_p = we_p.at[:, :dim, :dim].set(w_stack[:, dim:, :].astype(jnp.bfloat16))
    b_p = jnp.zeros((layers, dp), jnp.float32).at[:, :dim].set(b_stack)

    # --- VMEM budget: residents once, W double-buffered, temporaries counted --
    f32b, bf16b = 4, 2
    resident = (up * ip * bf16b          # hg (single resident copy)
                + ip * dp * f32b         # node_out accumulator
                + up * dp * f32b         # edge_out accumulator
                + ip * dp * bf16b        # item carry (bf16)
                + up * dp * f32b         # user carry (f32)
                + layers * dp * f32b)    # resident bias
    pipelined = 2 * 2 * (dp * dp * bf16b)        # double-buffered W_node + W_edge
    temps = (3 * up * dp * f32b                  # node_msg, edge_elem, msg
             + 3 * up * dp * bf16b               # bf16 casts of the above
             + ip * dp * f32b)                   # norm_emb
    need = resident + pipelined + temps + (4 << 20)   # + scheduling headroom
    cap = _vmem_cap_bytes()
    vmem_limit = int(min(cap - (4 << 20), max(32 << 20, need)))

    out_shapes = (
        jax.ShapeDtypeStruct((ip, dp), jnp.float32),
        jax.ShapeDtypeStruct((up, dp), jnp.float32),
    )

    grid_spec = pltpu.PrefetchScalarGridSpec(
        num_scalar_prefetch=0,
        grid=(layers,),
        in_specs=[
            # hyper_graph: layer-invariant, whole array resident in VMEM (bf16)
            pl.BlockSpec(memory_space=pltpu.MemorySpace.VMEM),
            # initial embeddings: stay in HBM, DMA'd once at layer 0
            pl.BlockSpec(memory_space=pl.ANY),                   # item_emb0
            pl.BlockSpec(memory_space=pl.ANY),                   # user_emb0
            # per-layer weights: pipelined (double-buffered) over the layer axis
            pl.BlockSpec((1, dp, dp), lambda l: (l, 0, 0)),      # W_node (bf16)
            pl.BlockSpec((1, dp, dp), lambda l: (l, 0, 0)),      # W_edge (bf16)
            # bias: tiny, whole array resident
            pl.BlockSpec(memory_space=pltpu.MemorySpace.VMEM),
        ],
        out_specs=[
            pl.BlockSpec((ip, dp), lambda l: (0, 0)),   # resident accumulator
            pl.BlockSpec((up, dp), lambda l: (0, 0)),   # resident accumulator
        ],
        scratch_shapes=[
            pltpu.VMEM((ip, dp), jnp.bfloat16),   # item_cur (layer carry, bf16)
            pltpu.VMEM((up, dp), jnp.float32),    # user_cur (layer carry, f32)
        ],
    )

    node_p, edge_p = pl.pallas_call(
        _hgcn_ui_kernel,
        out_shape=out_shapes,
        grid_spec=grid_spec,
        compiler_params=pltpu.CompilerParams(
            dimension_semantics=("arbitrary",),      # layers are a sequential carry
            vmem_limit_bytes=vmem_limit),
    )(hg_p, ie_p, ue_p, wn_p, we_p, b_p)

    return node_p[:n_items, :dim], edge_p[:n_users, :dim]


def _xavier_uniform(key, shape, fan_in, fan_out):
    limit = float(np.sqrt(6.0 / (fan_in + fan_out)))
    return jax.random.uniform(key, shape, jnp.float32, -limit, limit)


def _reference(hyper_graph, user_emb, item_emb, w_stack, b_stack):
    final_node = [item_emb]
    final_edge = [user_emb]
    for l in range(w_stack.shape[0]):
        node_msg = hyper_graph @ item_emb
        edge_elem = node_msg * user_emb
        msg = jnp.concatenate([node_msg, edge_elem], axis=1) @ w_stack[l] + b_stack[l]
        norm_emb = hyper_graph.T @ msg
        item_emb, user_emb = norm_emb, msg
        final_node.append(item_emb)
        final_edge.append(user_emb)
    return sum(final_node), sum(final_edge)


def _check(name, out, ref, tol=3e-2):
    out = np.asarray(out, dtype=np.float64)
    ref = np.asarray(ref, dtype=np.float64)
    err = np.max(np.abs(out - ref)) / (np.max(np.abs(ref)) + 1e-6)
    assert err < tol, f"{name}: normalized max error {err:.3e} exceeds {tol}"


if __name__ == "__main__":
    # Small, forward-consistent shapes.
    n_users, n_items, dim, layers = 8, 16, 32, 2

    key = jax.random.PRNGKey(0)
    k_hg, k_ue, k_ie, k_w, k_b = jax.random.split(key, 5)

    # Dense (binary) hypergraph incidence matrix [n_users, n_items].
    hyper_graph = (jax.random.uniform(k_hg, (n_users, n_items)) < 0.3).astype(jnp.float32)

    # Embeddings: xavier_uniform like nn.init.xavier_uniform_ on Embedding weights.
    user_emb = _xavier_uniform(k_ue, (n_users, dim), n_users, dim)
    item_emb = _xavier_uniform(k_ie, (n_items, dim), n_items, dim)

    # Per-layer Linear(2*dim, dim): torch weight is [dim, 2*dim]; we use its
    # transpose [2*dim, dim] (split into node/edge halves inside the wrapper).
    wkeys = jax.random.split(k_w, layers)
    bkeys = jax.random.split(k_b, layers)
    w_stack = jnp.stack([
        _xavier_uniform(wkeys[l], (2 * dim, dim), 2 * dim, dim) for l in range(layers)
    ])  # [layers, 2*dim, dim]
    b_stack = jnp.stack([
        jax.random.uniform(bkeys[l], (dim,), jnp.float32, -0.1, 0.1) for l in range(layers)
    ])  # [layers, dim]

    node_out, edge_out = hgcn_ui_forward(hyper_graph, user_emb, item_emb, w_stack, b_stack)
    node_out = jax.block_until_ready(node_out)
    edge_out = jax.block_until_ready(edge_out)

    ref_node, ref_edge = _reference(hyper_graph, user_emb, item_emb, w_stack, b_stack)
    # bf16 inputs on all three matmuls (f32 accumulation) -> few-percent tolerance.
    _check("final_node_emb", node_out, ref_node)
    _check("final_edge_emb", edge_out, ref_edge)

    # TODO(synk): user_forward's embedding lookup + user_predictor logits are
    # plain gathers/matmuls outside the propagation hot path and are not
    # included in this kernel.
    print("KERNEL_OK")
</pallas_src>

<mosaic_0001>
module attributes {stable_mosaic.version = 11 : i64} {
  func.func @_hgcn_ui_kernel(%arg0: i32, %arg1: memref<128x128xbf16, #tpu.memory_space<vmem>>, %arg2: memref<128x128xf32, #tpu.memory_space<any>>, %arg3: memref<128x128xf32, #tpu.memory_space<any>>, %arg4: memref<1x128x128xbf16, #tpu.memory_space<vmem>>, %arg5: memref<1x128x128xbf16, #tpu.memory_space<vmem>>, %arg6: memref<2x128xf32, #tpu.memory_space<vmem>>, %arg7: memref<128x128xf32, #tpu.memory_space<vmem>>, %arg8: memref<128x128xf32, #tpu.memory_space<vmem>>, %arg9: memref<128x128xbf16, #tpu.memory_space<vmem>>, %arg10: memref<128x128xf32, #tpu.memory_space<vmem>>) attributes {dimension_semantics = [#tpu.dimension_semantics<arbitrary>], iteration_bounds = array<i64: 2>, scalar_prefetch = 0 : i64, scratch_operands = 2 : i64, tpu.core_type = #tpu.core_type<tc>, window_params = [{pipeline_mode = #tpu.pipeline_mode<synchronous>, transform_indices = @transform_0, window_bounds = array<i64: 128, 128>}, {}, {}, {transform_indices = @transform_3, window_bounds = array<i64: 1, 128, 128>}, {transform_indices = @transform_4, window_bounds = array<i64: 1, 128, 128>}, {pipeline_mode = #tpu.pipeline_mode<synchronous>, transform_indices = @transform_5, window_bounds = array<i64: 2, 128>}, {pipeline_mode = #tpu.pipeline_mode<synchronous>, transform_indices = @transform_6, window_bounds = array<i64: 128, 128>}, {pipeline_mode = #tpu.pipeline_mode<synchronous>, transform_indices = @transform_7, window_bounds = array<i64: 128, 128>}]} {
    %c0_i32 = arith.constant 0 : i32
    %0 = arith.cmpi eq, %arg0, %c0_i32 : i32
    %1 = arith.extui %0 : i1 to i32
    %c0_i32_0 = arith.constant 0 : i32
    %2 = arith.cmpi ne, %1, %c0_i32_0 : i32
    scf.if %2 {
      "tpu.region"() ({
        %37 = tpu.sem_alloc : memref<!tpu.dma_semaphore, #tpu.memory_space<semaphore_mem>>
        tpu.enqueue_dma source(%arg2 : memref<128x128xf32, #tpu.memory_space<any>>) target(%arg7 : memref<128x128xf32, #tpu.memory_space<vmem>>) target_semaphore(%37 : memref<!tpu.dma_semaphore, #tpu.memory_space<semaphore_mem>>)
        tpu.wait_dma2 semaphore(%37 : memref<!tpu.dma_semaphore, #tpu.memory_space<semaphore_mem>>) src(%arg2 : memref<128x128xf32, #tpu.memory_space<any>>) dst(%arg7 : memref<128x128xf32, #tpu.memory_space<vmem>>)
        tpu.yield
      }) : () -> ()
      "tpu.region"() ({
        %37 = tpu.sem_alloc : memref<!tpu.dma_semaphore, #tpu.memory_space<semaphore_mem>>
        tpu.enqueue_dma source(%arg3 : memref<128x128xf32, #tpu.memory_space<any>>) target(%arg8 : memref<128x128xf32, #tpu.memory_space<vmem>>) target_semaphore(%37 : memref<!tpu.dma_semaphore, #tpu.memory_space<semaphore_mem>>)
        tpu.wait_dma2 semaphore(%37 : memref<!tpu.dma_semaphore, #tpu.memory_space<semaphore_mem>>) src(%arg3 : memref<128x128xf32, #tpu.memory_space<any>>) dst(%arg8 : memref<128x128xf32, #tpu.memory_space<vmem>>)
        tpu.yield
      }) : () -> ()
      %c0_28 = arith.constant 0 : index
      %c0_29 = arith.constant 0 : index
      %32 = vector.load %arg7[%c0_28, %c0_29] : memref<128x128xf32, #tpu.memory_space<vmem>>, vector<128x128xf32>
      %33 = arith.truncf %32 : vector<128x128xf32> to vector<128x128xbf16>
      %c0_30 = arith.constant 0 : index
      %c0_31 = arith.constant 0 : index
      %34 = vector.load %arg9[%c0_30, %c0_31] : memref<128x128xbf16, #tpu.memory_space<vmem>>, vector<128x128xbf16>
      tpu.vector_store %arg9[%c0_30, %c0_31], %33 {strides = array<i32>} : memref<128x128xbf16, #tpu.memory_space<vmem>>, vector<128x128xbf16>,
      %c0_32 = arith.constant 0 : index
      %c0_33 = arith.constant 0 : index
      %35 = vector.load %arg8[%c0_32, %c0_33] : memref<128x128xf32, #tpu.memory_space<vmem>>, vector<128x128xf32>
      %c0_34 = arith.constant 0 : index
      %c0_35 = arith.constant 0 : index
      %36 = vector.load %arg10[%c0_34, %c0_35] : memref<128x128xf32, #tpu.memory_space<vmem>>, vector<128x128xf32>
      tpu.vector_store %arg10[%c0_34, %c0_35], %35 {strides = array<i32>} : memref<128x128xf32, #tpu.memory_space<vmem>>, vector<128x128xf32>,
    } else {
    }
    %c0 = arith.constant 0 : index
    %c0_1 = arith.constant 0 : index
    %3 = vector.load %arg1[%c0, %c0_1] : memref<128x128xbf16, #tpu.memory_space<vmem>>, vector<128x128xbf16>
    %c0_2 = arith.constant 0 : index
    %c0_3 = arith.constant 0 : index
    %4 = vector.load %arg10[%c0_2, %c0_3] : memref<128x128xf32, #tpu.memory_space<vmem>>, vector<128x128xf32>
    %c0_4 = arith.constant 0 : index
    %c0_5 = arith.constant 0 : index
    %5 = vector.load %arg9[%c0_4, %c0_5] : memref<128x128xbf16, #tpu.memory_space<vmem>>, vector<128x128xbf16>
    %cst = arith.constant dense<0.000000e+00> : vector<128x128xf32>
    %6 = tpu.matmul %3, %5, %cst {dimension_numbers = #tpu.dot_dimension_numbers<[1], [0], [0], [1], [0, 0, 1, 1], [], []>} : vector<128x128xbf16>, vector<128x128xbf16>, vector<128x128xf32> -> vector<128x128xf32>
    %7 = arith.mulf %6, %4 : vector<128x128xf32>
    %8 = arith.index_cast %arg0 : i32 to index
    %c0_6 = arith.constant 0 : index
    %9 = vector.load %arg6[%8, %c0_6] : memref<2x128xf32, #tpu.memory_space<vmem>>, vector<1x128xf32>
    %10 = arith.truncf %6 : vector<128x128xf32> to vector<128x128xbf16>
    %c0_7 = arith.constant 0 : index
    %c0_8 = arith.constant 0 : index
    %c0_9 = arith.constant 0 : index
    %11 = vector.load %arg4[%c0_7, %c0_8, %c0_9] : memref<1x128x128xbf16, #tpu.memory_space<vmem>>, vector<1x128x128xbf16>
    %12 = vector.shape_cast %11 : vector<1x128x128xbf16> to vector<128x128xbf16>
    %cst_10 = arith.constant dense<0.000000e+00> : vector<128x128xf32>
    %13 = tpu.matmul %10, %12, %cst_10 {dimension_numbers = #tpu.dot_dimension_numbers<[1], [0], [0], [1], [0, 0, 1, 1], [], []>} : vector<128x128xbf16>, vector<128x128xbf16>, vector<128x128xf32> -> vector<128x128xf32>
    %14 = arith.truncf %7 : vector<128x128xf32> to vector<128x128xbf16>
    %c0_11 = arith.constant 0 : index
    %c0_12 = arith.constant 0 : index
    %c0_13 = arith.constant 0 : index
    %15 = vector.load %arg5[%c0_11, %c0_12, %c0_13] : memref<1x128x128xbf16, #tpu.memory_space<vmem>>, vector<1x128x128xbf16>
    %16 = vector.shape_cast %15 : vector<1x128x128xbf16> to vector<128x128xbf16>
    %cst_14 = arith.constant dense<0.000000e+00> : vector<128x128xf32>
    %17 = tpu.matmul %14, %16, %cst_14 {dimension_numbers = #tpu.dot_dimension_numbers<[1], [0], [0], [1], [0, 0, 1, 1], [], []>} : vector<128x128xbf16>, vector<128x128xbf16>, vector<128x128xf32> -> vector<128x128xf32>
    %18 = arith.addf %13, %17 : vector<128x128xf32>
    %19 = vector.broadcast %9 : vector<1x128xf32> to vector<128x128xf32>
    %20 = arith.addf %18, %19 : vector<128x128xf32>
    %21 = arith.truncf %20 : vector<128x128xf32> to vector<128x128xbf16>
    %cst_15 = arith.constant dense<0.000000e+00> : vector<128x128xf32>
    %22 = tpu.matmul %3, %21, %cst_15 {dimension_numbers = #tpu.dot_dimension_numbers<[0], [0], [1], [1], [0, 1, 1, 1], [], []>} : vector<128x128xbf16>, vector<128x128xbf16>, vector<128x128xf32> -> vector<128x128xf32>
    %23 = arith.truncf %22 : vector<128x128xf32> to vector<128x128xbf16>
    %c0_16 = arith.constant 0 : index
    %c0_17 = arith.constant 0 : index
    %24 = vector.load %arg9[%c0_16, %c0_17] : memref<128x128xbf16, #tpu.memory_space<vmem>>, vector<128x128xbf16>
    tpu.vector_store %arg9[%c0_16, %c0_17], %23 {strides = array<i32>} : memref<128x128xbf16, #tpu.memory_space<vmem>>, vector<128x128xbf16>,
    %c0_18 = arith.constant 0 : index
    %c0_19 = arith.constant 0 : index
    %25 = vector.load %arg10[%c0_18, %c0_19] : memref<128x128xf32, #tpu.memory_space<vmem>>, vector<128x128xf32>
    tpu.vector_store %arg10[%c0_18, %c0_19], %20 {strides = array<i32>} : memref<128x128xf32, #tpu.memory_space<vmem>>, vector<128x128xf32>,
    %c0_20 = arith.constant 0 : index
    %c0_21 = arith.constant 0 : index
    %26 = vector.load %arg7[%c0_20, %c0_21] : memref<128x128xf32, #tpu.memory_space<vmem>>, vector<128x128xf32>
    %27 = arith.addf %26, %22 : vector<128x128xf32>
    %c0_22 = arith.constant 0 : index
    %c0_23 = arith.constant 0 : index
    %28 = vector.load %arg7[%c0_22, %c0_23] : memref<128x128xf32, #tpu.memory_space<vmem>>, vector<128x128xf32>
    tpu.vector_store %arg7[%c0_22, %c0_23], %27 {strides = array<i32>} : memref<128x128xf32, #tpu.memory_space<vmem>>, vector<128x128xf32>,
    %c0_24 = arith.constant 0 : index
    %c0_25 = arith.constant 0 : index
    %29 = vector.load %arg8[%c0_24, %c0_25] : memref<128x128xf32, #tpu.memory_space<vmem>>, vector<128x128xf32>
    %30 = arith.addf %29, %20 : vector<128x128xf32>
    %c0_26 = arith.constant 0 : index
    %c0_27 = arith.constant 0 : index
    %31 = vector.load %arg8[%c0_26, %c0_27] : memref<128x128xf32, #tpu.memory_space<vmem>>, vector<128x128xf32>
    tpu.vector_store %arg8[%c0_26, %c0_27], %30 {strides = array<i32>} : memref<128x128xf32, #tpu.memory_space<vmem>>, vector<128x128xf32>,
    return
  }
  func.func @transform_0(%arg0: i32) -> (i32, i32) {
    %c0_i32 = arith.constant 0 : i32
    %c0_i32_0 = arith.constant 0 : i32
    %c0_i32_1 = arith.constant 0 : i32
    return %c0_i32, %c0_i32_0 : i32, i32
  }
  func.func @transform_3(%arg0: i32) -> (i32, i32, i32) {
    %c0_i32 = arith.constant 0 : i32
    %c0_i32_0 = arith.constant 0 : i32
    %c0_i32_1 = arith.constant 0 : i32
    return %arg0, %c0_i32, %c0_i32_0 : i32, i32, i32
  }
  func.func @transform_4(%arg0: i32) -> (i32, i32, i32) {
    %c0_i32 = arith.constant 0 : i32
    %c0_i32_0 = arith.constant 0 : i32
    %c0_i32_1 = arith.constant 0 : i32
    return %arg0, %c0_i32, %c0_i32_0 : i32, i32, i32
  }
  func.func @transform_5(%arg0: i32) -> (i32, i32) {
    %c0_i32 = arith.constant 0 : i32
    %c0_i32_0 = arith.constant 0 : i32
    %c0_i32_1 = arith.constant 0 : i32
    return %c0_i32, %c0_i32_0 : i32, i32
  }
  func.func @transform_6(%arg0: i32) -> (i32, i32) {
    %c0_i32 = arith.constant 0 : i32
    %c0_i32_0 = arith.constant 0 : i32
    %c0_i32_1 = arith.constant 0 : i32
    return %c0_i32, %c0_i32_0 : i32, i32
  }
  func.func @transform_7(%arg0: i32) -> (i32, i32) {
    %c0_i32 = arith.constant 0 : i32
    %c0_i32_0 = arith.constant 0 : i32
    %c0_i32_1 = arith.constant 0 : i32
    return %c0_i32, %c0_i32_0 : i32, i32
  }
}

</mosaic_0001>

<llo_original>
// kernel: tpu_custom_call.1
$region0: #{tpu_custom_call.1}
  #allocation0 [shape = 'u32[]', space=smem, size = 0x4, offset = 0x4, fixed_abs, tag = 'smem constant byte address 0x4 - core index']
  #allocation1 [shape = 'u32[144,128]{1,0:T(1,128)}', space=vmem, size = 0x12000, scoped, tag = 'internal scratch']
  #allocation2 [shape = 'bf16[128,128]{1,0:T(16,128)(2,1)}', space=vmem, size = 0x8000, scoped, tag = 'scratch operand']
  #allocation3 [shape = 'f32[128,128]{1,0:T(8,128)}', space=vmem, size = 0x10000, scoped, tag = 'scratch operand']
  #allocation14 [shape = 's32[]', space=sflag, size = 0x4, offset = 0, fixed_abs, tag = 'sflag constant byte address 0x0 - dummy sync flag']
  #allocation15 [shape = 's32[]', space=sflag, size = 0x4, offset = 0, fixed_abs, tag = 'sflag constant byte address 0x0 - dummy sync flag']
  #allocation16 [shape = 'u32[]', space=smem, size = 0x4, offset = 0x44, fixed_abs, tag = 'smem constant byte address 0x44 - assertion arg 0']
  #allocation17 [shape = 'u32[]', space=smem, size = 0x4, offset = 0x48, fixed_abs, tag = 'smem constant byte address 0x48 - assertion arg 1']
  #allocation19 [shape = 's32[]', space=sflag, size = 0x4, offset = 0, fixed_abs, tag = 'sflag constant byte address 0x0 - dummy sync flag']
  #allocation20 [shape = 's32[]', space=sflag, size = 0x4, offset = 0, fixed_abs, tag = 'sflag constant byte address 0x0 - dummy sync flag']
  %s0 = inlined_call_operand.hbm [shape: bf16[128,128], index: 0, kind: input, shape index: {}]
  %s1 = inlined_call_operand.hbm [shape: f32[128,128], index: 1, kind: input, shape index: {}]
  %s2 = inlined_call_operand.hbm [shape: f32[128,128], index: 2, kind: input, shape index: {}]
  %s3 = inlined_call_operand.hbm [shape: bf16[2,128,128], index: 3, kind: input, shape index: {}]
  %s4 = inlined_call_operand.hbm [shape: bf16[2,128,128], index: 4, kind: input, shape index: {}]
  %s5 = inlined_call_operand.vmem [shape: f32[2,128], index: 5, kind: input, shape index: {}]
  %s6 = inlined_call_operand.hbm [shape: f32[128,128], index: 6, kind: output, shape index: {0}]
  %s7 = inlined_call_operand.hbm [shape: f32[128,128], index: 7, kind: output, shape index: {1}]
  %8 = xla_tuple %s6, %s7
  %s9 = sld [smem:[#allocation0]]
  $region83: #{tpu_custom_call.1} parent=0
    _
  %s11 = ssub.s32 1, %s9
  %s12 = scalar_select 0, %s11, %s9
  $region1: #{tpu_custom_call.1} parent=0
    #allocation4 [shape = 'u8[32768]{0}', space=vmem, size = 0x8000, scoped, tag = 'input window, operand 0, single buffered']
    #allocation5 [shape = 's32[2]{0}', space=sflag, size = 0x8, scoped, tag = 'scoped memory for tpu_custom_call.1']
    #allocation6 [shape = 's32[2]{0}', space=sflag, size = 0x8, scoped, tag = 'scoped memory for tpu_custom_call.1']
    #allocation7 [shape = 'u8[65536]{0}', space=vmem, size = 0x10000, scoped, tag = 'input window, operand 3']
    #allocation8 [shape = 's32[2]{0}', space=sflag, size = 0x8, scoped, tag = 'scoped memory for tpu_custom_call.1']
    #allocation9 [shape = 'u8[65536]{0}', space=vmem, size = 0x10000, scoped, tag = 'input window, operand 4']
    #allocation10 [shape = 'u8[65536]{0}', space=vmem, size = 0x10000, scoped, tag = 'output window, operand 0, single buffered']
    #allocation11 [shape = 'u8[65536]{0}', space=vmem, size = 0x10000, scoped, tag = 'output window, operand 1, single buffered']
    #allocation12 [shape = 's32[1]{0}', space=sflag, size = 0x4, scoped, tag = 'scoped memory for tpu_custom_call.1']
    %13 = vsyncpa [#allocation5], 0
    %14 = vsyncpa [#allocation8], 0
    %s15 = scalar_lea.sflag [#allocation8], 1
    %16 = vsyncpa %s15, 0
    %17 = vsyncpa [#allocation6], 0
    %18 = vsyncpa [#allocation12], 0
    loop: start=0, step=1, limit=4
    $region2: #{tpu_custom_call.1} parent=1 // loop_pre_header
      _
    $region3: #{tpu_custom_call.1} parent=1 // loop_header
      %s20 = sphi 0, %s24
      %p21 = scmp.ge.s32.totalorder %s20, 4
      %s28 = sphi 0, %s28
      %s30 = sphi 0, %s28
      %s31 = sphi 0, %s30
      %s45 = sphi 0, %s31
      %s51 = sphi 0, %s53
      %s54 = sphi 0, %s51
      %s55 = sphi 0, %s54
      %s71 = sphi 0, %s55
      %s77 = sphi 0, %s79
      %s80 = sphi 0, %s77
      %s81 = sphi 0, %s80
      %s97 = sphi 0, %s81
      %s101 = sphi 0, %s101
      %s103 = sphi 0, %s101
      %s104 = sphi 0, %s103
      %s118 = sphi 0, %s104
      %s122 = sphi 0, %s122
      %s124 = sphi 0, %s122
      %s125 = sphi 0, %s124
      %s139 = sphi 0, %s125
      %s143 = sphi 0, %s143
      %s145 = sphi 0, %s143
      %s146 = sphi 0, %s145
      %s160 = sphi 0, %s146
    $region4: #{tpu_custom_call.1} parent=1 // loop_header_branch
      %23 = sbr.rel (%p21) target = $region8
    $region5: #{tpu_custom_call.1} parent=1 // loop_body
      %s25 = ssub.s32 %s20, 1
      %s26 = ssub.s32 %s20, 2
      %s27 = sadd.s32 %s20, 1
      %s29 = sadd.s32 %s28, 1
      %p32 = scmp.eq.s32.totalorder %s20, 1
      %p33 = scmp.ne.s32.totalorder %s28, %s30
      %p34 = scmp.eq.s32.totalorder %s20, 0
      %p35 = por %p33, %p34
      %p36 = scmp.ne.s32.totalorder %s28, %s30
      %p37 = scmp.eq.s32.totalorder %s25, 1
      %p38 = por %p36, %p37
      %p39 = scmp.ne.s32.totalorder %s30, %s31
      %p40 = scmp.eq.s32.totalorder %s25, 0
      %p41 = por %p39, %p40
      %p42 = scmp.ne.s32.totalorder %s30, %s31
      %p43 = scmp.eq.s32.totalorder %s26, 1
      %p44 = por %p42, %p43
      %p46 = scmp.ne.s32.totalorder %s31, %s45
      %p47 = scmp.eq.s32.totalorder %s26, 0
      %p48 = por %p46, %p47
      %s49 = ssub.s32 %s20, %s27
      %p50 = scmp.eq.s32.totalorder %s49, 0
      %s52 = sadd.s32 %s51, 1
      %s53 = scalar_select %p50, %s51, %s52
      %p56 = pneg %p50
      %p57 = scmp.eq.s32.totalorder %s20, 1
      %p58 = por %p56, %p57
      %p59 = scmp.ne.s32.totalorder %s51, %s54
      %p60 = scmp.eq.s32.totalorder %s20, 0
      %p61 = por %p59, %p60
      %p62 = scmp.ne.s32.totalorder %s51, %s54
      %p63 = scmp.eq.s32.totalorder %s25, 1
      %p64 = por %p62, %p63
      %p65 = scmp.ne.s32.totalorder %s54, %s55
      %p66 = scmp.eq.s32.totalorder %s25, 0
      %p67 = por %p65, %p66
      %p68 = scmp.ne.s32.totalorder %s54, %s55
      %p69 = scmp.eq.s32.totalorder %s26, 1
      %p70 = por %p68, %p69
      %p72 = scmp.ne.s32.totalorder %s55, %s71
      %p73 = scmp.eq.s32.totalorder %s26, 0
      %p74 = por %p72, %p73
      %s75 = ssub.s32 %s20, %s27
      %p76 = scmp.eq.s32.totalorder %s75, 0
      %s78 = sadd.s32 %s77, 1
      %s79 = scalar_select %p76, %s77, %s78
      %p82 = pneg %p76
      %p83 = scmp.eq.s32.totalorder %s20, 1
      %p84 = por %p82, %p83
      %p85 = scmp.ne.s32.totalorder %s77, %s80
      %p86 = scmp.eq.s32.totalorder %s20, 0
      %p87 = por %p85, %p86
      %p88 = scmp.ne.s32.totalorder %s77, %s80
      %p89 = scmp.eq.s32.totalorder %s25, 1
      %p90 = por %p88, %p89
      %p91 = scmp.ne.s32.totalorder %s80, %s81
      %p92 = scmp.eq.s32.totalorder %s25, 0
      %p93 = por %p91, %p92
      %p94 = scmp.ne.s32.totalorder %s80, %s81
      %p95 = scmp.eq.s32.totalorder %s26, 1
      %p96 = por %p94, %p95
      %p98 = scmp.ne.s32.totalorder %s81, %s97
      %p99 = scmp.eq.s32.totalorder %s26, 0
      %p100 = por %p98, %p99
      %s102 = sadd.s32 %s101, 1
      %p105 = scmp.eq.s32.totalorder %s20, 1
      %p106 = scmp.ne.s32.totalorder %s101, %s103
      %p107 = scmp.eq.s32.totalorder %s20, 0
      %p108 = por %p106, %p107
      %p109 = scmp.ne.s32.totalorder %s101, %s103
      %p110 = scmp.eq.s32.totalorder %s25, 1
      %p111 = por %p109, %p110
      %p112 = scmp.ne.s32.totalorder %s103, %s104
      %p113 = scmp.eq.s32.totalorder %s25, 0
      %p114 = por %p112, %p113
      %p115 = scmp.ne.s32.totalorder %s103, %s104
      %p116 = scmp.eq.s32.totalorder %s26, 1
      %p117 = por %p115, %p116
      %p119 = scmp.ne.s32.totalorder %s104, %s118
      %p120 = scmp.eq.s32.totalorder %s26, 0
      %p121 = por %p119, %p120
      %s123 = sadd.s32 %s122, 1
      %p126 = scmp.eq.s32.totalorder %s20, 1
      %p127 = scmp.ne.s32.totalorder %s122, %s124
      %p128 = scmp.eq.s32.totalorder %s20, 0
      %p129 = por %p127, %p128
      %p130 = scmp.ne.s32.totalorder %s122, %s124
      %p131 = scmp.eq.s32.totalorder %s25, 1
      %p132 = por %p130, %p131
      %p133 = scmp.ne.s32.totalorder %s124, %s125
      %p134 = scmp.eq.s32.totalorder %s25, 0
      %p135 = por %p133, %p134
      %p136 = scmp.ne.s32.totalorder %s124, %s125
      %p137 = scmp.eq.s32.totalorder %s26, 1
      %p138 = por %p136, %p137
      %p140 = scmp.ne.s32.totalorder %s125, %s139
      %p141 = scmp.eq.s32.totalorder %s26, 0
      %p142 = por %p140, %p141
      %s144 = sadd.s32 %s143, 1
      %p147 = scmp.eq.s32.totalorder %s20, 1
      %p148 = scmp.ne.s32.totalorder %s143, %s145
      %p149 = scmp.eq.s32.totalorder %s20, 0
      %p150 = por %p148, %p149
      %p151 = scmp.ne.s32.totalorder %s143, %s145
      %p152 = scmp.eq.s32.totalorder %s25, 1
      %p153 = por %p151, %p152
      %p154 = scmp.ne.s32.totalorder %s145, %s146
      %p155 = scmp.eq.s32.totalorder %s25, 0
      %p156 = por %p154, %p155
      %p157 = scmp.ne.s32.totalorder %s145, %s146
      %p158 = scmp.eq.s32.totalorder %s26, 1
      %p159 = por %p157, %p158
      %p161 = scmp.ne.s32.totalorder %s146, %s160
      %p162 = scmp.eq.s32.totalorder %s26, 0
      %p163 = por %p161, %p162
      %p164 = scmp.le.s32.totalorder 1, %s20
      %p165 = scmp.lt.s32.totalorder %s20, 3
      %p166 = pnand %p164, %p165
      %p167 = pneg %p166
      // Predicated region
      $region9: #{tpu_custom_call.1} parent=5 // pred_check
        _
      $region10: #{tpu_custom_call.1} parent=5 // pred_check_branch
        %169 = sbr.rel (%p166) target = $region12
      $region11: #{tpu_custom_call.1} parent=5 // pred_region
        %s170 = ssub.s32 %s20, 1
        // Predicated region
        $region13: #{tpu_custom_call.1} parent=11 // pred_check
          %p171 = pneg %p41
        $region14: #{tpu_custom_call.1} parent=11 // pred_check_branch
          %173 = sbr.rel (%p171) target = $region16
        $region15: #{tpu_custom_call.1} parent=11 // pred_region
          %s175 = ssub.s32 1024, 1024
          %176 = vsyncadd [#allocation5], %s175
          %s177 = sshll.u32 [#allocation4], 4
          %s178 = int_to_ptr.vmem [resolvable:$true] %s177
          %183 = dma.hbm_to_vmem [thread:$0]  %s0, 1024, %s178, [#allocation5], 64, 64, 4
        $region16: #{tpu_custom_call.1} parent=11 // pred_fallthru
          _
        // Predicated region
        $region17: #{tpu_custom_call.1} parent=11 // pred_check
          %p184 = pneg %p114
        $region18: #{tpu_custom_call.1} parent=11 // pred_check_branch
          %186 = sbr.rel (%p184) target = $region20
        $region19: #{tpu_custom_call.1} parent=11 // pred_region
          _
        $region20: #{tpu_custom_call.1} parent=11 // pred_fallthru
          _
      $region12: #{tpu_custom_call.1} parent=5 // pred_fallthru
        _
      %p187 = scmp.lt.s32.totalorder %s20, 2
      // Predicated region
      $region21: #{tpu_custom_call.1} parent=5 // pred_check
        %p188 = pneg %p187
      $region22: #{tpu_custom_call.1} parent=5 // pred_check_branch
        %190 = sbr.rel (%p188) target = $region24
      $region23: #{tpu_custom_call.1} parent=5 // pred_region
        // Predicated region
        $region25: #{tpu_custom_call.1} parent=23 // pred_check
          %p191 = pneg %p61
        $region26: #{tpu_custom_call.1} parent=23 // pred_check_branch
          %193 = sbr.rel (%p191) target = $region28
        $region27: #{tpu_custom_call.1} parent=23 // pred_region
          %s194 = sand.u32 %s20, 1
          %s195 = scalar_lea.sflag [#allocation8], %s194
          %s196 = sand.u32 %s51, 1
          %s197 = smul.addr %s196, 64
          %s198 = scalar_lea.vmem [#allocation7], %s197
          %s200 = ssub.s32 1024, 1024
          %201 = vsyncadd %s195, %s200
          %s202 = smul.addr %s20, 16
          %s203 = smul.addr %s202, 64
          %s204 = scalar_lea.hbm %s3, %s203
          %s205 = sshll.u32 %s198, 4
          %s206 = int_to_ptr.vmem [resolvable:$true] %s205
          %211 = dma.hbm_to_vmem [thread:$0]  %s204, 1024, %s206, %s195, 64, 64, 4
        $region28: #{tpu_custom_call.1} parent=23 // pred_fallthru
          _
        // Predicated region
        $region29: #{tpu_custom_call.1} parent=23 // pred_check
          %p212 = pneg %p87
        $region30: #{tpu_custom_call.1} parent=23 // pred_check_branch
          %214 = sbr.rel (%p212) target = $region32
        $region31: #{tpu_custom_call.1} parent=23 // pred_region
          %s215 = sand.u32 %s20, 1
          %s216 = scalar_lea.sflag [#allocation8], %s215
          %s217 = sand.u32 %s77, 1
          %s218 = smul.addr %s217, 64
          %s219 = scalar_lea.vmem [#allocation9], %s218
          %s221 = ssub.s32 1024, 1024
          %222 = vsyncadd %s216, %s221
          %s223 = smul.addr %s20, 16
          %s224 = smul.addr %s223, 64
          %s225 = scalar_lea.hbm %s4, %s224
          %s226 = sshll.u32 %s219, 4
          %s227 = int_to_ptr.vmem [resolvable:$true] %s226
          %232 = dma.hbm_to_vmem [thread:$0]  %s225, 1024, %s227, %s216, 64, 64, 4
        $region32: #{tpu_custom_call.1} parent=23 // pred_fallthru
          _
      $region24: #{tpu_custom_call.1} parent=5 // pred_fallthru
        _
      %p233 = scmp.le.s32.totalorder 1, %s20
      %p234 = scmp.lt.s32.totalorder %s20, 3
      %p235 = pnand %p233, %p234
      %p236 = pneg %p235
      // Predicated region
      $region33: #{tpu_custom_call.1} parent=5 // pred_check
        _
      $region34: #{tpu_custom_call.1} parent=5 // pred_check_branch
        %238 = sbr.rel (%p235) target = $region36
      $region35: #{tpu_custom_call.1} parent=5 // pred_region
        %s239 = ssub.s32 %s20, 1
        // Predicated region
        $region37: #{tpu_custom_call.1} parent=35 // pred_check
          %p240 = pneg %p41
        $region38: #{tpu_custom_call.1} parent=35 // pred_check_branch
          %242 = sbr.rel (%p240) target = $region40
        $region39: #{tpu_custom_call.1} parent=35 // pred_region
          %243 = dma.done [#allocation5], 1024
        $region40: #{tpu_custom_call.1} parent=35 // pred_fallthru
          _
        %s244 = sand.u32 %s25, 1
        %s245 = scalar_lea.sflag [#allocation8], %s244
        %s246 = sand.u32 %s54, 1
        %s247 = smul.addr %s246, 64
        %s248 = scalar_lea.vmem [#allocation7], %s247
        // Predicated region
        $region41: #{tpu_custom_call.1} parent=35 // pred_check
          %p249 = pneg %p67
        $region42: #{tpu_custom_call.1} parent=35 // pred_check_branch
          %251 = sbr.rel (%p249) target = $region44
        $region43: #{tpu_custom_call.1} parent=35 // pred_region
          %252 = dma.done %s245, 1024
        $region44: #{tpu_custom_call.1} parent=35 // pred_fallthru
          _
        %s253 = sand.u32 %s25, 1
        %s254 = scalar_lea.sflag [#allocation8], %s253
        %s255 = sand.u32 %s80, 1
        %s256 = smul.addr %s255, 64
        %s257 = scalar_lea.vmem [#allocation9], %s256
        // Predicated region
        $region45: #{tpu_custom_call.1} parent=35 // pred_check
          %p258 = pneg %p93
        $region46: #{tpu_custom_call.1} parent=35 // pred_check_branch
          %260 = sbr.rel (%p258) target = $region48
        $region47: #{tpu_custom_call.1} parent=35 // pred_region
          %261 = dma.done %s254, 1024
        $region48: #{tpu_custom_call.1} parent=35 // pred_fallthru
          _
        %p262 = pneg %p41
        %p263 = pneg %p38
        %s264 = sand.u32 %s25, 1
        %s265 = scalar_lea.sflag [#allocation8], %s264
        %s266 = sand.u32 %s54, 1
        %s267 = smul.addr %s266, 64
        %s268 = scalar_lea.vmem [#allocation7], %s267
        %p269 = pneg %p67
        %p270 = pneg %p64
        %s271 = sand.u32 %s25, 1
        %s272 = scalar_lea.sflag [#allocation8], %s271
        %s273 = sand.u32 %s80, 1
        %s274 = smul.addr %s273, 64
        %s275 = scalar_lea.vmem [#allocation9], %s274
        %p276 = pneg %p93
        %p277 = pneg %p90
        %p278 = pneg %p114
        %p279 = pneg %p111
        %p280 = pneg %p135
        %p281 = pneg %p132
        %p282 = pneg %p156
        %p283 = pneg %p153
        %p285 = scmp.eq.s32.totalorder %s25, 0
        // Predicated region
        $region49: #{tpu_custom_call.1} parent=35 // pred_check
          %p286 = pneg %p285
        $region50: #{tpu_custom_call.1} parent=35 // pred_check_branch
          %288 = sbr.rel (%p286) target = $region52
        $region51: #{tpu_custom_call.1} parent=35 // pred_region
          $region53: #{tpu_custom_call.1} parent=51
            #allocation13 [shape = 's32[1]{0}', space=sflag, size = 0x4, scoped, tag = 'scoped memory for tpu_custom_call.1']
            // Predicated region
            $region54: #{tpu_custom_call.1} parent=53 // pred_check
              _
            $region55: #{tpu_custom_call.1} parent=53 // pred_check_branch
              %290 = sbr.rel target = $region57
            $region56: #{tpu_custom_call.1} parent=53 // pred_region
              %291 = sst [smem:[#allocation16]] [#allocation15]
              %292 = sst [smem:[#allocation17]] [#allocation14]
            $region57: #{tpu_custom_call.1} parent=53 // pred_fallthru
              _
            %294 = shalt.err (0)
            %s296 = sshll.u32 [#allocation10], 4
            %s297 = int_to_ptr.vmem [resolvable:$true] %s296
            %299 = dma.hbm_to_vmem [thread:$0]  %s1, 2048, %s297, [#allocation13]
            %s300 = smul.u32 128, 1
            %s301 = sshll.u32 %s300, 4
            %302 = dma.done [#allocation13], %s301
          $region58: #{tpu_custom_call.1} parent=51
            #allocation18 [shape = 's32[1]{0}', space=sflag, size = 0x4, scoped, tag = 'scoped memory for tpu_custom_call.1']
            // Predicated region
            $region59: #{tpu_custom_call.1} parent=58 // pred_check
              _
            $region60: #{tpu_custom_call.1} parent=58 // pred_check_branch
              %304 = sbr.rel target = $region62
            $region61: #{tpu_custom_call.1} parent=58 // pred_region
              %305 = sst [smem:[#allocation16]] [#allocation20]
              %306 = sst [smem:[#allocation17]] [#allocation19]
            $region62: #{tpu_custom_call.1} parent=58 // pred_fallthru
              _
            %308 = shalt.err (0)
            %s310 = sshll.u32 [#allocation11], 4
            %s311 = int_to_ptr.vmem [resolvable:$true] %s310
            %313 = dma.hbm_to_vmem [thread:$0]  %s2, 2048, %s311, [#allocation18]
            %s314 = smul.u32 128, 1
            %s315 = sshll.u32 %s314, 4
            %316 = dma.done [#allocation18], %s315
          %v317 = vld [vmem:[#allocation10] sm:$0xff]
          %v318 = vld [vmem:[#allocation10 + $0x8] sm:$0xff]
          %v319 = vld [vmem:[#allocation10 + $0x10] sm:$0xff]
          %v320 = vld [vmem:[#allocation10 + $0x18] sm:$0xff]
          %v321 = vld [vmem:[#allocation10 + $0x20] sm:$0xff]
          %v322 = vld [vmem:[#allocation10 + $0x28] sm:$0xff]
          %v323 = vld [vmem:[#allocation10 + $0x30] sm:$0xff]
          %v324 = vld [vmem:[#allocation10 + $0x38] sm:$0xff]
          %v325 = vld [vmem:[#allocation10 + $0x40] sm:$0xff]
          %v326 = vld [vmem:[#allocation10 + $0x48] sm:$0xff]
          %v327 = vld [vmem:[#allocation10 + $0x50] sm:$0xff]
          %v328 = vld [vmem:[#allocation10 + $0x58] sm:$0xff]
          %v329 = vld [vmem:[#allocation10 + $0x60] sm:$0xff]
          %v330 = vld [vmem:[#allocation10 + $0x68] sm:$0xff]
          %v331 = vld [vmem:[#allocation10 + $0x70] sm:$0xff]
          %v332 = vld [vmem:[#allocation10 + $0x78] sm:$0xff]
          %v333 = vpack.c.bf16 %v318, %v317
          %v334 = vpack.c.bf16 %v320, %v319
          %v335 = vpack.c.bf16 %v322, %v321
          %v336 = vpack.c.bf16 %v324, %v323
          %v337 = vpack.c.bf16 %v326, %v325
          %v338 = vpack.c.bf16 %v328, %v327
          %v339 = vpack.c.bf16 %v330, %v329
          %v340 = vpack.c.bf16 %v332, %v331
          %341 = vst [vmem:[#allocation2] sm:$0xff] %v333
          %342 = vst [vmem:[#allocation2 + $0x8] sm:$0xff] %v334
          %343 = vst [vmem:[#allocation2 + $0x10] sm:$0xff] %v335
          %344 = vst [vmem:[#allocation2 + $0x18] sm:$0xff] %v336
          %345 = vst [vmem:[#allocation2 + $0x20] sm:$0xff] %v337
          %346 = vst [vmem:[#allocation2 + $0x28] sm:$0xff] %v338
          %347 = vst [vmem:[#allocation2 + $0x30] sm:$0xff] %v339
          %348 = vst [vmem:[#allocation2 + $0x38] sm:$0xff] %v340
          %v349 = vld [vmem:[#allocation11] sm:$0xff]
          %v350 = vld [vmem:[#allocation11 + $0x8] sm:$0xff]
          %v351 = vld [vmem:[#allocation11 + $0x10] sm:$0xff]
          %v352 = vld [vmem:[#allocation11 + $0x18] sm:$0xff]
          %v353 = vld [vmem:[#allocation11 + $0x20] sm:$0xff]
          %v354 = vld [vmem:[#allocation11 + $0x28] sm:$0xff]
          %v355 = vld [vmem:[#allocation11 + $0x30] sm:$0xff]
          %v356 = vld [vmem:[#allocation11 + $0x38] sm:$0xff]
          %v357 = vld [vmem:[#allocation11 + $0x40] sm:$0xff]
          %v358 = vld [vmem:[#allocation11 + $0x48] sm:$0xff]
          %v359 = vld [vmem:[#allocation11 + $0x50] sm:$0xff]
          %v360 = vld [vmem:[#allocation11 + $0x58] sm:$0xff]
          %v361 = vld [vmem:[#allocation11 + $0x60] sm:$0xff]
          %v362 = vld [vmem:[#allocation11 + $0x68] sm:$0xff]
          %v363 = vld [vmem:[#allocation11 + $0x70] sm:$0xff]
          %v364 = vld [vmem:[#allocation11 + $0x78] sm:$0xff]
          %365 = vst [vmem:[#allocation3] sm:$0xff] %v349
          %366 = vst [vmem:[#allocation3 + $0x8] sm:$0xff] %v350
          %367 = vst [vmem:[#allocation3 + $0x10] sm:$0xff] %v351
          %368 = vst [vmem:[#allocation3 + $0x18] sm:$0xff] %v352
          %369 = vst [vmem:[#allocation3 + $0x20] sm:$0xff] %v353
          %370 = vst [vmem:[#allocation3 + $0x28] sm:$0xff] %v354
          %371 = vst [vmem:[#allocation3 + $0x30] sm:$0xff] %v355
          %372 = vst [vmem:[#allocation3 + $0x38] sm:$0xff] %v356
          %373 = vst [vmem:[#allocation3 + $0x40] sm:$0xff] %v357
          %374 = vst [vmem:[#allocation3 + $0x48] sm:$0xff] %v358
          %375 = vst [vmem:[#allocation3 + $0x50] sm:$0xff] %v359
          %376 = vst [vmem:[#allocation3 + $0x58] sm:$0xff] %v360
          %377 = vst [vmem:[#allocation3 + $0x60] sm:$0xff] %v361
          %378 = vst [vmem:[#allocation3 + $0x68] sm:$0xff] %v362
          %379 = vst [vmem:[#allocation3 + $0x70] sm:$0xff] %v363
          %380 = vst [vmem:[#allocation3 + $0x78] sm:$0xff] %v364
        $region52: #{tpu_custom_call.1} parent=35 // pred_fallthru
          _
        %v381 = vld [vmem:[#allocation4] sm:$0xf]
        %v382 = vld [vmem:[#allocation4 + $0x4] sm:$0xf]
        %v383 = vld [vmem:[#allocation4 + $0x8] sm:$0xf]
        %v384 = vld [vmem:[#allocation4 + $0xc] sm:$0xf]
        %v385 = vld [vmem:[#allocation4 + $0x10] sm:$0xf]
        %v386 = vld [vmem:[#allocation4 + $0x14] sm:$0xf]
        %v387 = vld [vmem:[#allocation4 + $0x18] sm:$0xf]
        %v388 = vld [vmem:[#allocation4 + $0x1c] sm:$0xf]
        %v389 = vld [vmem:[#allocation4 + $0x20] sm:$0xf]
        %v390 = vld [vmem:[#allocation4 + $0x24] sm:$0xf]
        %v391 = vld [vmem:[#allocation4 + $0x28] sm:$0xf]
        %v392 = vld [vmem:[#allocation4 + $0x2c] sm:$0xf]
        %v393 = vld [vmem:[#allocation4 + $0x30] sm:$0xf]
        %v394 = vld [vmem:[#allocation4 + $0x34] sm:$0xf]
        %v395 = vld [vmem:[#allocation4 + $0x38] sm:$0xf]
        %v396 = vld [vmem:[#allocation4 + $0x3c] sm:$0xf]
        %v397 = vld [vmem:[#allocation3] sm:$0xff]
        %v398 = vld [vmem:[#allocation3 + $0x8] sm:$0xff]
        %v399 = vld [vmem:[#allocation3 + $0x10] sm:$0xff]
        %v400 = vld [vmem:[#allocation3 + $0x18] sm:$0xff]
        %v401 = vld [vmem:[#allocation3 + $0x20] sm:$0xff]
        %v402 = vld [vmem:[#allocation3 + $0x28] sm:$0xff]
        %v403 = vld [vmem:[#allocation3 + $0x30] sm:$0xff]
        %v404 = vld [vmem:[#allocation3 + $0x38] sm:$0xff]
        %v405 = vld [vmem:[#allocation3 + $0x40] sm:$0xff]
        %v406 = vld [vmem:[#allocation3 + $0x48] sm:$0xff]
        %v407 = vld [vmem:[#allocation3 + $0x50] sm:$0xff]
        %v408 = vld [vmem:[#allocation3 + $0x58] sm:$0xff]
        %v409 = vld [vmem:[#allocation3 + $0x60] sm:$0xff]
        %v410 = vld [vmem:[#allocation3 + $0x68] sm:$0xff]
        %v411 = vld [vmem:[#allocation3 + $0x70] sm:$0xff]
        %v412 = vld [vmem:[#allocation3 + $0x78] sm:$0xff]
        %v413 = vld [vmem:[#allocation2] sm:$0xff]
        %v414 = vld [vmem:[#allocation2 + $0x8] sm:$0xff]
        %v415 = vld [vmem:[#allocation2 + $0x10] sm:$0xff]
        %v416 = vld [vmem:[#allocation2 + $0x18] sm:$0xff]
        %v417 = vld [vmem:[#allocation2 + $0x20] sm:$0xff]
        %v418 = vld [vmem:[#allocation2 + $0x28] sm:$0xff]
        %v419 = vld [vmem:[#allocation2 + $0x30] sm:$0xff]
        %v420 = vld [vmem:[#allocation2 + $0x38] sm:$0xff]
        %v437 = vunpack.c.l.b16 %v381
        %v438 = vunpack.c.l.b16 %v382
        %v439 = vunpack.c.l.b16 %v383
        %v440 = vunpack.c.l.b16 %v384
        %v441 = vunpack.c.l.b16 %v385
        %v442 = vunpack.c.l.b16 %v386
        %v443 = vunpack.c.l.b16 %v387
        %v444 = vunpack.c.l.b16 %v388
        %v445 = vunpack.c.l.b16 %v389
        %v446 = vunpack.c.l.b16 %v390
        %v447 = vunpack.c.l.b16 %v391
        %v448 = vunpack.c.l.b16 %v392
        %v449 = vunpack.c.l.b16 %v393
        %v450 = vunpack.c.l.b16 %v394
        %v451 = vunpack.c.l.b16 %v395
        %v452 = vunpack.c.l.b16 %v396
        %v453 = vpack.c.b16 %v438, %v437
        %v454 = vpack.c.b16 %v440, %v439
        %v455 = vpack.c.b16 %v442, %v441
        %v456 = vpack.c.b16 %v444, %v443
        %v457 = vpack.c.b16 %v446, %v445
        %v458 = vpack.c.b16 %v448, %v447
        %v459 = vpack.c.b16 %v450, %v449
        %v460 = vpack.c.b16 %v452, %v451
        %469 = vmatprep.subr.bf16.mxu0 0
        %470 = vmatpush1.bf16.msra.mxu0 %v413
        %471 = vmatprep.subr.bf16.mxu0 0
        %472 = vmatpush1.bf16.msra.mxu0 %v414
        %473 = vmatprep.subr.bf16.mxu0 0
        %474 = vmatpush1.bf16.msra.mxu0 %v415
        %475 = vmatprep.subr.bf16.mxu0 0
        %476 = vmatpush1.bf16.msra.mxu0 %v416
        %477 = vmatprep.subr.bf16.mxu0 0
        %478 = vmatpush1.bf16.msra.mxu0 %v417
        %479 = vmatprep.subr.bf16.mxu0 0
        %480 = vmatpush1.bf16.msra.mxu0 %v418
        %481 = vmatprep.subr.bf16.mxu0 0
        %482 = vmatpush1.bf16.msra.mxu0 %v419
        %483 = vmatprep.subr.bf16.mxu0 0
        %484 = vmatpush1.bf16.msra.mxu0 %v420
        %485 = vmatprep.subr.bf16.mxu0 0
        %486 = vmatpush1.bf16.msra.mxu0 0
        %487 = vmatprep.subr.bf16.mxu0 0
        %488 = vmatpush1.bf16.msra.mxu0 0
        %489 = vmatprep.subr.bf16.mxu0 0
        %490 = vmatpush1.bf16.msra.mxu0 0
        %491 = vmatprep.subr.bf16.mxu0 0
        %492 = vmatpush1.bf16.msra.mxu0 0
        %493 = vmatprep.subr.bf16.mxu0 0
        %494 = vmatpush1.bf16.msra.mxu0 0
        %495 = vmatprep.subr.bf16.mxu0 0
        %496 = vmatpush1.bf16.msra.mxu0 0
        %497 = vmatprep.subr.bf16.mxu0 0
        %498 = vmatpush1.bf16.msra.mxu0 0
        %499 = vmatprep.subr.bf16.mxu0 0
        %500 = vmatpush1.bf16.msra.mxu0 0
        %501 = vmatprep.mubr.bf16.mxu0 0
        %502 = vmatmul.mubr.bf16.gmra.mrb[0].mxu0 %v453
        %v503 = vpop.f32.mrb[0].mxu0
        %v504 = vadd.f32 0.0, %v503
        %v505 = vpop.f32.mrb[0].mxu0
        %v506 = vpop.f32.mrb[0].mxu0
        %v507 = vadd.f32 0.0, %v506
        %v508 = vpop.f32.mrb[0].mxu0
        %509 = vmatprep.mubr.bf16.mxu0 0
        %510 = vmatmul.mubr.bf16.gmra.mrb[0].mxu0 %v454
        %v511 = vpop.f32.mrb[0].mxu0
        %v512 = vadd.f32 0.0, %v511
        %v513 = vpop.f32.mrb[0].mxu0
        %v514 = vpop.f32.mrb[0].mxu0
        %v515 = vadd.f32 0.0, %v514
        %v516 = vpop.f32.mrb[0].mxu0
        %517 = vmatprep.mubr.bf16.mxu0 0
        %518 = vmatmul.mubr.bf16.gmra.mrb[0].mxu0 %v455
        %v519 = vpop.f32.mrb[0].mxu0
        %v520 = vadd.f32 0.0, %v519
        %v521 = vpop.f32.mrb[0].mxu0
        %v522 = vpop.f32.mrb[0].mxu0
        %v523 = vadd.f32 0.0, %v522
        %v524 = vpop.f32.mrb[0].mxu0
        %525 = vmatprep.mubr.bf16.mxu0 0
        %526 = vmatmul.mubr.bf16.gmra.mrb[0].mxu0 %v456
        %v527 = vpop.f32.mrb[0].mxu0
        %v528 = vadd.f32 0.0, %v527
        %v529 = vpop.f32.mrb[0].mxu0
        %v530 = vpop.f32.mrb[0].mxu0
        %v531 = vadd.f32 0.0, %v530
        %v532 = vpop.f32.mrb[0].mxu0
        %533 = vmatprep.mubr.bf16.mxu0 0
        %534 = vmatmul.mubr.bf16.gmra.mrb[0].mxu0 %v457
        %v535 = vpop.f32.mrb[0].mxu0
        %v536 = vadd.f32 0.0, %v535
        %v537 = vpop.f32.mrb[0].mxu0
        %v538 = vpop.f32.mrb[0].mxu0
        %v539 = vadd.f32 0.0, %v538
        %v540 = vpop.f32.mrb[0].mxu0
        %541 = vmatprep.mubr.bf16.mxu0 0
        %542 = vmatmul.mubr.bf16.gmra.mrb[0].mxu0 %v458
        %v543 = vpop.f32.mrb[0].mxu0
        %v544 = vadd.f32 0.0, %v543
        %v545 = vpop.f32.mrb[0].mxu0
        %v546 = vpop.f32.mrb[0].mxu0
        %v547 = vadd.f32 0.0, %v546
        %v548 = vpop.f32.mrb[0].mxu0
        %549 = vmatprep.mubr.bf16.mxu0 0
        %550 = vmatmul.mubr.bf16.gmra.mrb[0].mxu0 %v459
        %v551 = vpop.f32.mrb[0].mxu0
        %v552 = vadd.f32 0.0, %v551
        %v553 = vpop.f32.mrb[0].mxu0
        %v554 = vpop.f32.mrb[0].mxu0
        %v555 = vadd.f32 0.0, %v554
        %v556 = vpop.f32.mrb[0].mxu0
        %557 = vmatprep.mubr.bf16.mxu0 0
        %558 = vmatmul.mubr.bf16.gmra.mrb[0].mxu0 %v460
        %v559 = vpop.f32.mrb[0].mxu0
        %v560 = vadd.f32 0.0, %v559
        %v561 = vpop.f32.mrb[0].mxu0
        %v562 = vpop.f32.mrb[0].mxu0
        %v563 = vadd.f32 0.0, %v562
        %v564 = vpop.f32.mrb[0].mxu0
        %565 = vdwg.mxu0
        %v566 = vmul.f32 %v504, %v397
        %v567 = vmul.f32 %v507, %v398
        %v568 = vmul.f32 %v512, %v399
        %v569 = vmul.f32 %v515, %v400
        %v570 = vmul.f32 %v520, %v401
        %v571 = vmul.f32 %v523, %v402
        %v572 = vmul.f32 %v528, %v403
        %v573 = vmul.f32 %v531, %v404
        %v574 = vmul.f32 %v536, %v405
        %v575 = vmul.f32 %v539, %v406
        %v576 = vmul.f32 %v544, %v407
        %v577 = vmul.f32 %v547, %v408
        %v578 = vmul.f32 %v552, %v409
        %v579 = vmul.f32 %v555, %v410
        %v580 = vmul.f32 %v560, %v411
        %v581 = vmul.f32 %v563, %v412
        %s582 = scalar_lea.vmem %s5, %s25
        %v583 = vld [vmem:[%s582] sm:$0x1]
        %v584 = vpack.c.bf16 %v507, %v504
        %v585 = vpack.c.bf16 %v515, %v512
        %v586 = vpack.c.bf16 %v523, %v520
        %v587 = vpack.c.bf16 %v531, %v528
        %v588 = vpack.c.bf16 %v539, %v536
        %v589 = vpack.c.bf16 %v547, %v544
        %v590 = vpack.c.bf16 %v555, %v552
        %v591 = vpack.c.bf16 %v563, %v560
        %v592 = vld [vmem:[%s248] sm:$0xf]
        %v593 = vld [vmem:[%s248 + $0x4] sm:$0xf]
        %v594 = vld [vmem:[%s248 + $0x8] sm:$0xf]
        %v595 = vld [vmem:[%s248 + $0xc] sm:$0xf]
        %v596 = vld [vmem:[%s248 + $0x10] sm:$0xf]
        %v597 = vld [vmem:[%s248 + $0x14] sm:$0xf]
        %v598 = vld [vmem:[%s248 + $0x18] sm:$0xf]
        %v599 = vld [vmem:[%s248 + $0x1c] sm:$0xf]
        %v600 = vld [vmem:[%s248 + $0x20] sm:$0xf]
        %v601 = vld [vmem:[%s248 + $0x24] sm:$0xf]
        %v602 = vld [vmem:[%s248 + $0x28] sm:$0xf]
        %v603 = vld [vmem:[%s248 + $0x2c] sm:$0xf]
        %v604 = vld [vmem:[%s248 + $0x30] sm:$0xf]
        %v605 = vld [vmem:[%s248 + $0x34] sm:$0xf]
        %v606 = vld [vmem:[%s248 + $0x38] sm:$0xf]
        %v607 = vld [vmem:[%s248 + $0x3c] sm:$0xf]
        %v608 = vpack.c.bf16 %v567, %v566
        %v609 = vpack.c.bf16 %v569, %v568
        %v610 = vpack.c.bf16 %v571, %v570
        %v611 = vpack.c.bf16 %v573, %v572
        %v612 = vpack.c.bf16 %v575, %v574
        %v613 = vpack.c.bf16 %v577, %v576
        %v614 = vpack.c.bf16 %v579, %v578
        %v615 = vpack.c.bf16 %v581, %v580
        %v616 = vld [vmem:[%s257] sm:$0xf]
        %v617 = vld [vmem:[%s257 + $0x4] sm:$0xf]
        %v618 = vld [vmem:[%s257 + $0x8] sm:$0xf]
        %v619 = vld [vmem:[%s257 + $0xc] sm:$0xf]
        %v620 = vld [vmem:[%s257 + $0x10] sm:$0xf]
        %v621 = vld [vmem:[%s257 + $0x14] sm:$0xf]
        %v622 = vld [vmem:[%s257 + $0x18] sm:$0xf]
        %v623 = vld [vmem:[%s257 + $0x1c] sm:$0xf]
        %v624 = vld [vmem:[%s257 + $0x20] sm:$0xf]
        %v625 = vld [vmem:[%s257 + $0x24] sm:$0xf]
        %v626 = vld [vmem:[%s257 + $0x28] sm:$0xf]
        %v627 = vld [vmem:[%s257 + $0x2c] sm:$0xf]
        %v628 = vld [vmem:[%s257 + $0x30] sm:$0xf]
        %v629 = vld [vmem:[%s257 + $0x34] sm:$0xf]
        %v630 = vld [vmem:[%s257 + $0x38] sm:$0xf]
        %v631 = vld [vmem:[%s257 + $0x3c] sm:$0xf]
        %v648 = vunpack.c.l.b16 %v616
        %v649 = vunpack.c.l.b16 %v617
        %v650 = vunpack.c.l.b16 %v618
        %v651 = vunpack.c.l.b16 %v619
        %v652 = vunpack.c.l.b16 %v620
        %v653 = vunpack.c.l.b16 %v621
        %v654 = vunpack.c.l.b16 %v622
        %v655 = vunpack.c.l.b16 %v623
        %v656 = vunpack.c.l.b16 %v624
        %v657 = vunpack.c.l.b16 %v625
        %v658 = vunpack.c.l.b16 %v626
        %v659 = vunpack.c.l.b16 %v627
        %v660 = vunpack.c.l.b16 %v628
        %v661 = vunpack.c.l.b16 %v629
        %v662 = vunpack.c.l.b16 %v630
        %v663 = vunpack.c.l.b16 %v631
        %v664 = vpack.c.b16 %v649, %v648
        %v665 = vpack.c.b16 %v651, %v650
        %v666 = vpack.c.b16 %v653, %v652
        %v667 = vpack.c.b16 %v655, %v654
        %v668 = vpack.c.b16 %v657, %v656
        %v669 = vpack.c.b16 %v659, %v658
        %v670 = vpack.c.b16 %v661, %v660
        %v671 = vpack.c.b16 %v663, %v662
        %680 = vmatprep.subr.bf16.mxu0 0
        %681 = vmatpush1.bf16.msra.mxu0 %v664
        %682 = vmatprep.subr.bf16.mxu0 0
        %683 = vmatpush1.bf16.msra.mxu0 %v665
        %684 = vmatprep.subr.bf16.mxu0 0
        %685 = vmatpush1.bf16.msra.mxu0 %v666
        %686 = vmatprep.subr.bf16.mxu0 0
        %687 = vmatpush1.bf16.msra.mxu0 %v667
        %688 = vmatprep.subr.bf16.mxu0 0
        %689 = vmatpush1.bf16.msra.mxu0 %v668
        %690 = vmatprep.subr.bf16.mxu0 0
        %691 = vmatpush1.bf16.msra.mxu0 %v669
        %692 = vmatprep.subr.bf16.mxu0 0
        %693 = vmatpush1.bf16.msra.mxu0 %v670
        %694 = vmatprep.subr.bf16.mxu0 0
        %695 = vmatpush1.bf16.msra.mxu0 %v671
        %696 = vmatprep.subr.bf16.mxu0 0
        %697 = vmatpush1.bf16.msra.mxu0 0
        %698 = vmatprep.subr.bf16.mxu0 0
        %699 = vmatpush1.bf16.msra.mxu0 0
        %700 = vmatprep.subr.bf16.mxu0 0
        %701 = vmatpush1.bf16.msra.mxu0 0
        %702 = vmatprep.subr.bf16.mxu0 0
        %703 = vmatpush1.bf16.msra.mxu0 0
        %704 = vmatprep.subr.bf16.mxu0 0
        %705 = vmatpush1.bf16.msra.mxu0 0
        %706 = vmatprep.subr.bf16.mxu0 0
        %707 = vmatpush1.bf16.msra.mxu0 0
        %708 = vmatprep.subr.bf16.mxu0 0
        %709 = vmatpush1.bf16.msra.mxu0 0
        %710 = vmatprep.subr.bf16.mxu0 0
        %711 = vmatpush1.bf16.msra.mxu0 0
        %712 = vmatprep.mubr.bf16.mxu0 0
        %713 = vmatmul.mubr.bf16.gmra.mrb[0].mxu0 %v608
        %v714 = vpop.f32.mrb[0].mxu0
        %v715 = vadd.f32 0.0, %v714
        %v716 = vpop.f32.mrb[0].mxu0
        %v717 = vpop.f32.mrb[0].mxu0
        %v718 = vadd.f32 0.0, %v717
        %v719 = vpop.f32.mrb[0].mxu0
        %720 = vmatprep.mubr.bf16.mxu0 0
        %721 = vmatmul.mubr.bf16.gmra.mrb[0].mxu0 %v609
        %v722 = vpop.f32.mrb[0].mxu0
        %v723 = vadd.f32 0.0, %v722
        %v724 = vpop.f32.mrb[0].mxu0
        %v725 = vpop.f32.mrb[0].mxu0
        %v726 = vadd.f32 0.0, %v725
        %v727 = vpop.f32.mrb[0].mxu0
        %728 = vmatprep.mubr.bf16.mxu0 0
        %729 = vmatmul.mubr.bf16.gmra.mrb[0].mxu0 %v610
        %v730 = vpop.f32.mrb[0].mxu0
        %v731 = vadd.f32 0.0, %v730
        %v732 = vpop.f32.mrb[0].mxu0
        %v733 = vpop.f32.mrb[0].mxu0
        %v734 = vadd.f32 0.0, %v733
        %v735 = vpop.f32.mrb[0].mxu0
        %736 = vmatprep.mubr.bf16.mxu0 0
        %737 = vmatmul.mubr.bf16.gmra.mrb[0].mxu0 %v611
        %v738 = vpop.f32.mrb[0].mxu0
        %v739 = vadd.f32 0.0, %v738
        %v740 = vpop.f32.mrb[0].mxu0
        %v741 = vpop.f32.mrb[0].mxu0
        %v742 = vadd.f32 0.0, %v741
        %v743 = vpop.f32.mrb[0].mxu0
        %744 = vmatprep.mubr.bf16.mxu0 0
        %745 = vmatmul.mubr.bf16.gmra.mrb[0].mxu0 %v612
        %v746 = vpop.f32.mrb[0].mxu0
        %v747 = vadd.f32 0.0, %v746
        %v748 = vpop.f32.mrb[0].mxu0
        %v749 = vpop.f32.mrb[0].mxu0
        %v750 = vadd.f32 0.0, %v749
        %v751 = vpop.f32.mrb[0].mxu0
        %752 = vmatprep.mubr.bf16.mxu0 0
        %753 = vmatmul.mubr.bf16.gmra.mrb[0].mxu0 %v613
        %v754 = vpop.f32.mrb[0].mxu0
        %v755 = vadd.f32 0.0, %v754
        %v756 = vpop.f32.mrb[0].mxu0
        %v757 = vpop.f32.mrb[0].mxu0
        %v758 = vadd.f32 0.0, %v757
        %v759 = vpop.f32.mrb[0].mxu0
        %760 = vmatprep.mubr.bf16.mxu0 0
        %761 = vmatmul.mubr.bf16.gmra.mrb[0].mxu0 %v614
        %v762 = vpop.f32.mrb[0].mxu0
        %v763 = vadd.f32 0.0, %v762
        %v764 = vpop.f32.mrb[0].mxu0
        %v765 = vpop.f32.mrb[0].mxu0
        %v766 = vadd.f32 0.0, %v765
        %v767 = vpop.f32.mrb[0].mxu0
        %768 = vmatprep.mubr.bf16.mxu0 0
        %769 = vmatmul.mubr.bf16.gmra.mrb[0].mxu0 %v615
        %v770 = vpop.f32.mrb[0].mxu0
        %v771 = vadd.f32 0.0, %v770
        %v772 = vpop.f32.mrb[0].mxu0
        %v773 = vpop.f32.mrb[0].mxu0
        %v774 = vadd.f32 0.0, %v773
        %v775 = vpop.f32.mrb[0].mxu0
        %776 = vdwg.mxu0
        %v793 = vunpack.c.l.b16 %v592
        %v794 = vunpack.c.l.b16 %v593
        %v795 = vunpack.c.l.b16 %v594
        %v796 = vunpack.c.l.b16 %v595
        %v797 = vunpack.c.l.b16 %v596
        %v798 = vunpack.c.l.b16 %v597
        %v799 = vunpack.c.l.b16 %v598
        %v800 = vunpack.c.l.b16 %v599
        %v801 = vunpack.c.l.b16 %v600
        %v802 = vunpack.c.l.b16 %v601
        %v803 = vunpack.c.l.b16 %v602
        %v804 = vunpack.c.l.b16 %v603
        %v805 = vunpack.c.l.b16 %v604
        %v806 = vunpack.c.l.b16 %v605
        %v807 = vunpack.c.l.b16 %v606
        %v808 = vunpack.c.l.b16 %v607
        %v809 = vpack.c.b16 %v794, %v793
        %v810 = vpack.c.b16 %v796, %v795
        %v811 = vpack.c.b16 %v798, %v797
        %v812 = vpack.c.b16 %v800, %v799
        %v813 = vpack.c.b16 %v802, %v801
        %v814 = vpack.c.b16 %v804, %v803
        %v815 = vpack.c.b16 %v806, %v805
        %v816 = vpack.c.b16 %v808, %v807
        %825 = vmatprep.subr.bf16.mxu0 0
        %826 = vmatpush1.bf16.msra.mxu0 %v809
        %827 = vmatprep.subr.bf16.mxu0 0
        %828 = vmatpush1.bf16.msra.mxu0 %v810
        %829 = vmatprep.subr.bf16.mxu0 0
        %830 = vmatpush1.bf16.msra.mxu0 %v811
        %831 = vmatprep.subr.bf16.mxu0 0
        %832 = vmatpush1.bf16.msra.mxu0 %v812
        %833 = vmatprep.subr.bf16.mxu0 0
        %834 = vmatpush1.bf16.msra.mxu0 %v813
        %835 = vmatprep.subr.bf16.mxu0 0
        %836 = vmatpush1.bf16.msra.mxu0 %v814
        %837 = vmatprep.subr.bf16.mxu0 0
        %838 = vmatpush1.bf16.msra.mxu0 %v815
        %839 = vmatprep.subr.bf16.mxu0 0
        %840 = vmatpush1.bf16.msra.mxu0 %v816
        %841 = vmatprep.subr.bf16.mxu0 0
        %842 = vmatpush1.bf16.msra.mxu0 0
        %843 = vmatprep.subr.bf16.mxu0 0
        %844 = vmatpush1.bf16.msra.mxu0 0
        %845 = vmatprep.subr.bf16.mxu0 0
        %846 = vmatpush1.bf16.msra.mxu0 0
        %847 = vmatprep.subr.bf16.mxu0 0
        %848 = vmatpush1.bf16.msra.mxu0 0
        %849 = vmatprep.subr.bf16.mxu0 0
        %850 = vmatpush1.bf16.msra.mxu0 0
        %851 = vmatprep.subr.bf16.mxu0 0
        %852 = vmatpush1.bf16.msra.mxu0 0
        %853 = vmatprep.subr.bf16.mxu0 0
        %854 = vmatpush1.bf16.msra.mxu0 0
        %855 = vmatprep.subr.bf16.mxu0 0
        %856 = vmatpush1.bf16.msra.mxu0 0
        %857 = vmatprep.mubr.bf16.mxu0 0
        %858 = vmatmul.mubr.bf16.gmra.mrb[0].mxu0 %v584
        %v859 = vpop.f32.mrb[0].mxu0
        %v860 = vadd.f32 %v715, %v859
        %v861 = vpop.f32.mrb[0].mxu0
        %v862 = vpop.f32.mrb[0].mxu0
        %v863 = vadd.f32 %v718, %v862
        %v864 = vpop.f32.mrb[0].mxu0
        %865 = vmatprep.mubr.bf16.mxu0 0
        %866 = vmatmul.mubr.bf16.gmra.mrb[0].mxu0 %v585
        %v867 = vpop.f32.mrb[0].mxu0
        %v868 = vadd.f32 %v723, %v867
        %v869 = vpop.f32.mrb[0].mxu0
        %v870 = vpop.f32.mrb[0].mxu0
        %v871 = vadd.f32 %v726, %v870
        %v872 = vpop.f32.mrb[0].mxu0
        %873 = vmatprep.mubr.bf16.mxu0 0
        %874 = vmatmul.mubr.bf16.gmra.mrb[0].mxu0 %v586
        %v875 = vpop.f32.mrb[0].mxu0
        %v876 = vadd.f32 %v731, %v875
        %v877 = vpop.f32.mrb[0].mxu0
        %v878 = vpop.f32.mrb[0].mxu0
        %v879 = vadd.f32 %v734, %v878
        %v880 = vpop.f32.mrb[0].mxu0
        %881 = vmatprep.mubr.bf16.mxu0 0
        %882 = vmatmul.mubr.bf16.gmra.mrb[0].mxu0 %v587
        %v883 = vpop.f32.mrb[0].mxu0
        %v884 = vadd.f32 %v739, %v883
        %v885 = vpop.f32.mrb[0].mxu0
        %v886 = vpop.f32.mrb[0].mxu0
        %v887 = vadd.f32 %v742, %v886
        %v888 = vpop.f32.mrb[0].mxu0
        %889 = vmatprep.mubr.bf16.mxu0 0
        %890 = vmatmul.mubr.bf16.gmra.mrb[0].mxu0 %v588
        %v891 = vpop.f32.mrb[0].mxu0
        %v892 = vadd.f32 %v747, %v891
        %v893 = vpop.f32.mrb[0].mxu0
        %v894 = vpop.f32.mrb[0].mxu0
        %v895 = vadd.f32 %v750, %v894
        %v896 = vpop.f32.mrb[0].mxu0
        %897 = vmatprep.mubr.bf16.mxu0 0
        %898 = vmatmul.mubr.bf16.gmra.mrb[0].mxu0 %v589
        %v899 = vpop.f32.mrb[0].mxu0
        %v900 = vadd.f32 %v755, %v899
        %v901 = vpop.f32.mrb[0].mxu0
        %v902 = vpop.f32.mrb[0].mxu0
        %v903 = vadd.f32 %v758, %v902
        %v904 = vpop.f32.mrb[0].mxu0
        %905 = vmatprep.mubr.bf16.mxu0 0
        %906 = vmatmul.mubr.bf16.gmra.mrb[0].mxu0 %v590
        %v907 = vpop.f32.mrb[0].mxu0
        %v908 = vadd.f32 %v763, %v907
        %v909 = vpop.f32.mrb[0].mxu0
        %v910 = vpop.f32.mrb[0].mxu0
        %v911 = vadd.f32 %v766, %v910
        %v912 = vpop.f32.mrb[0].mxu0
        %913 = vmatprep.mubr.bf16.mxu0 0
        %914 = vmatmul.mubr.bf16.gmra.mrb[0].mxu0 %v591
        %v915 = vpop.f32.mrb[0].mxu0
        %v916 = vadd.f32 %v771, %v915
        %v917 = vpop.f32.mrb[0].mxu0
        %v918 = vpop.f32.mrb[0].mxu0
        %v919 = vadd.f32 %v774, %v918
        %v920 = vpop.f32.mrb[0].mxu0
        %921 = vdwg.mxu0
        %v922 = vlaneseq
        %v923 = vshrl.u32 %v922, 7
        %v924 = vsub.s32 0, %v923
        %v925 = vrot.slane %v583, %v924
        %v926 = vadd.f32 %v860, %v925
        %v927 = vadd.f32 %v863, %v925
        %v928 = vadd.f32 %v868, %v925
        %v929 = vadd.f32 %v871, %v925
        %v930 = vadd.f32 %v876, %v925
        %v931 = vadd.f32 %v879, %v925
        %v932 = vadd.f32 %v884, %v925
        %v933 = vadd.f32 %v887, %v925
        %v934 = vadd.f32 %v892, %v925
        %v935 = vadd.f32 %v895, %v925
        %v936 = vadd.f32 %v900, %v925
        %v937 = vadd.f32 %v903, %v925
        %v938 = vadd.f32 %v908, %v925
        %v939 = vadd.f32 %v911, %v925
        %v940 = vadd.f32 %v916, %v925
        %v941 = vadd.f32 %v919, %v925
        %v942 = vpack.c.bf16 %v927, %v926
        %v943 = vpack.c.bf16 %v929, %v928
        %v944 = vpack.c.bf16 %v931, %v930
        %v945 = vpack.c.bf16 %v933, %v932
        %v946 = vpack.c.bf16 %v935, %v934
        %v947 = vpack.c.bf16 %v937, %v936
        %v948 = vpack.c.bf16 %v939, %v938
        %v949 = vpack.c.bf16 %v941, %v940
        %950 = vxpose.xlu0.c.b16.start [1/8] %v453, 128
        %951 = vxpose.xlu0.c.b16.cont [2/8] %v454, 128
        %952 = vxpose.xlu0.c.b16.cont [3/8] %v455, 128
        %953 = vxpose.xlu0.c.b16.cont [4/8] %v456, 128
        %954 = vxpose.xlu0.c.b16.cont [5/8] %v457, 128
        %955 = vxpose.xlu0.c.b16.cont [6/8] %v458, 128
        %956 = vxpose.xlu0.c.b16.cont [7/8] %v459, 128
        %957 = vxpose.xlu0.c.b16.end [8/8] %v460, 128
        %v958 = vpop.trf.xlu0
        %v959 = vpop.trf.xlu0
        %v960 = vpop.trf.xlu0
        %v961 = vpop.trf.xlu0
        %v962 = vpop.trf.xlu0
        %v963 = vpop.trf.xlu0
        %v964 = vpop.trf.xlu0
        %v965 = vpop.trf.xlu0
        %966 = vmatprep.subr.bf16.mxu0 0
        %967 = vmatpush1.bf16.msra.mxu0 %v942
        %968 = vmatprep.subr.bf16.mxu0 0
        %969 = vmatpush1.bf16.msra.mxu0 %v943
        %970 = vmatprep.subr.bf16.mxu0 0
        %971 = vmatpush1.bf16.msra.mxu0 %v944
        %972 = vmatprep.subr.bf16.mxu0 0
        %973 = vmatpush1.bf16.msra.mxu0 %v945
        %974 = vmatprep.subr.bf16.mxu0 0
        %975 = vmatpush1.bf16.msra.mxu0 %v946
        %976 = vmatprep.subr.bf16.mxu0 0
        %977 = vmatpush1.bf16.msra.mxu0 %v947
        %978 = vmatprep.subr.bf16.mxu0 0
        %979 = vmatpush1.bf16.msra.mxu0 %v948
        %980 = vmatprep.subr.bf16.mxu0 0
        %981 = vmatpush1.bf16.msra.mxu0 %v949
        %982 = vmatprep.subr.bf16.mxu0 0
        %983 = vmatpush1.bf16.msra.mxu0 0
        %984 = vmatprep.subr.bf16.mxu0 0
        %985 = vmatpush1.bf16.msra.mxu0 0
        %986 = vmatprep.subr.bf16.mxu0 0
        %987 = vmatpush1.bf16.msra.mxu0 0
        %988 = vmatprep.subr.bf16.mxu0 0
        %989 = vmatpush1.bf16.msra.mxu0 0
        %990 = vmatprep.subr.bf16.mxu0 0
        %991 = vmatpush1.bf16.msra.mxu0 0
        %992 = vmatprep.subr.bf16.mxu0 0
        %993 = vmatpush1.bf16.msra.mxu0 0
        %994 = vmatprep.subr.bf16.mxu0 0
        %995 = vmatpush1.bf16.msra.mxu0 0
        %996 = vmatprep.subr.bf16.mxu0 0
        %997 = vmatpush1.bf16.msra.mxu0 0
        %998 = vmatprep.mubr.bf16.mxu0 0
        %999 = vmatmul.mubr.bf16.gmra.mrb[0].mxu0 %v958
        %v1000 = vpop.f32.mrb[0].mxu0
        %v1001 = vadd.f32 0.0, %v1000
        %v1002 = vpop.f32.mrb[0].mxu0
        %v1003 = vpop.f32.mrb[0].mxu0
        %v1004 = vadd.f32 0.0, %v1003
        %v1005 = vpop.f32.mrb[0].mxu0
        %1006 = vmatprep.mubr.bf16.mxu0 0
        %1007 = vmatmul.mubr.bf16.gmra.mrb[0].mxu0 %v959
        %v1008 = vpop.f32.mrb[0].mxu0
        %v1009 = vadd.f32 0.0, %v1008
        %v1010 = vpop.f32.mrb[0].mxu0
        %v1011 = vpop.f32.mrb[0].mxu0
        %v1012 = vadd.f32 0.0, %v1011
        %v1013 = vpop.f32.mrb[0].mxu0
        %1014 = vmatprep.mubr.bf16.mxu0 0
        %1015 = vmatmul.mubr.bf16.gmra.mrb[0].mxu0 %v960
        %v1016 = vpop.f32.mrb[0].mxu0
        %v1017 = vadd.f32 0.0, %v1016
        %v1018 = vpop.f32.mrb[0].mxu0
        %v1019 = vpop.f32.mrb[0].mxu0
        %v1020 = vadd.f32 0.0, %v1019
        %v1021 = vpop.f32.mrb[0].mxu0
        %1022 = vmatprep.mubr.bf16.mxu0 0
        %1023 = vmatmul.mubr.bf16.gmra.mrb[0].mxu0 %v961
        %v1024 = vpop.f32.mrb[0].mxu0
        %v1025 = vadd.f32 0.0, %v1024
        %v1026 = vpop.f32.mrb[0].mxu0
        %v1027 = vpop.f32.mrb[0].mxu0
        %v1028 = vadd.f32 0.0, %v1027
        %v1029 = vpop.f32.mrb[0].mxu0
        %1030 = vmatprep.mubr.bf16.mxu0 0
        %1031 = vmatmul.mubr.bf16.gmra.mrb[0].mxu0 %v962
        %v1032 = vpop.f32.mrb[0].mxu0
        %v1033 = vadd.f32 0.0, %v1032
        %v1034 = vpop.f32.mrb[0].mxu0
        %v1035 = vpop.f32.mrb[0].mxu0
        %v1036 = vadd.f32 0.0, %v1035
        %v1037 = vpop.f32.mrb[0].mxu0
        %1038 = vmatprep.mubr.bf16.mxu0 0
        %1039 = vmatmul.mubr.bf16.gmra.mrb[0].mxu0 %v963
        %v1040 = vpop.f32.mrb[0].mxu0
        %v1041 = vadd.f32 0.0, %v1040
        %v1042 = vpop.f32.mrb[0].mxu0
        %v1043 = vpop.f32.mrb[0].mxu0
        %v1044 = vadd.f32 0.0, %v1043
        %v1045 = vpop.f32.mrb[0].mxu0
        %1046 = vmatprep.mubr.bf16.mxu0 0
        %1047 = vmatmul.mubr.bf16.gmra.mrb[0].mxu0 %v964
        %v1048 = vpop.f32.mrb[0].mxu0
        %v1049 = vadd.f32 0.0, %v1048
        %v1050 = vpop.f32.mrb[0].mxu0
        %v1051 = vpop.f32.mrb[0].mxu0
        %v1052 = vadd.f32 0.0, %v1051
        %v1053 = vpop.f32.mrb[0].mxu0
        %1054 = vmatprep.mubr.bf16.mxu0 0
        %1055 = vmatmul.mubr.bf16.gmra.mrb[0].mxu0 %v965
        %v1056 = vpop.f32.mrb[0].mxu0
        %v1057 = vadd.f32 0.0, %v1056
        %v1058 = vpop.f32.mrb[0].mxu0
        %v1059 = vpop.f32.mrb[0].mxu0
        %v1060 = vadd.f32 0.0, %v1059
        %v1061 = vpop.f32.mrb[0].mxu0
        %1062 = vdwg.mxu0
        %v1063 = vpack.c.bf16 %v1004, %v1001
        %v1064 = vpack.c.bf16 %v1012, %v1009
        %v1065 = vpack.c.bf16 %v1020, %v1017
        %v1066 = vpack.c.bf16 %v1028, %v1025
        %v1067 = vpack.c.bf16 %v1036, %v1033
        %v1068 = vpack.c.bf16 %v1044, %v1041
        %v1069 = vpack.c.bf16 %v1052, %v1049
        %v1070 = vpack.c.bf16 %v1060, %v1057
        %1071 = vst [vmem:[#allocation2] sm:$0xff] %v1063
        %1072 = vst [vmem:[#allocation2 + $0x8] sm:$0xff] %v1064
        %1073 = vst [vmem:[#allocation2 + $0x10] sm:$0xff] %v1065
        %1074 = vst [vmem:[#allocation2 + $0x18] sm:$0xff] %v1066
        %1075 = vst [vmem:[#allocation2 + $0x20] sm:$0xff] %v1067
        %1076 = vst [vmem:[#allocation2 + $0x28] sm:$0xff] %v1068
        %1077 = vst [vmem:[#allocation2 + $0x30] sm:$0xff] %v1069
        %1078 = vst [vmem:[#allocation2 + $0x38] sm:$0xff] %v1070
        %1079 = vst [vmem:[#allocation3] sm:$0xff] %v926
        %1080 = vst [vmem:[#allocation3 + $0x8] sm:$0xff] %v927
        %1081 = vst [vmem:[#allocation3 + $0x10] sm:$0xff] %v928
        %1082 = vst [vmem:[#allocation3 + $0x18] sm:$0xff] %v929
        %1083 = vst [vmem:[#allocation3 + $0x20] sm:$0xff] %v930
        %1084 = vst [vmem:[#allocation3 + $0x28] sm:$0xff] %v931
        %1085 = vst [vmem:[#allocation3 + $0x30] sm:$0xff] %v932
        %1086 = vst [vmem:[#allocation3 + $0x38] sm:$0xff] %v933
        %1087 = vst [vmem:[#allocation3 + $0x40] sm:$0xff] %v934
        %1088 = vst [vmem:[#allocation3 + $0x48] sm:$0xff] %v935
        %1089 = vst [vmem:[#allocation3 + $0x50] sm:$0xff] %v936
        %1090 = vst [vmem:[#allocation3 + $0x58] sm:$0xff] %v937
        %1091 = vst [vmem:[#allocation3 + $0x60] sm:$0xff] %v938
        %1092 = vst [vmem:[#allocation3 + $0x68] sm:$0xff] %v939
        %1093 = vst [vmem:[#allocation3 + $0x70] sm:$0xff] %v940
        %1094 = vst [vmem:[#allocation3 + $0x78] sm:$0xff] %v941
        %v1095 = vld [vmem:[#allocation10] sm:$0xff]
        %v1096 = vld [vmem:[#allocation10 + $0x8] sm:$0xff]
        %v1097 = vld [vmem:[#allocation10 + $0x10] sm:$0xff]
        %v1098 = vld [vmem:[#allocation10 + $0x18] sm:$0xff]
        %v1099 = vld [vmem:[#allocation10 + $0x20] sm:$0xff]
        %v1100 = vld [vmem:[#allocation10 + $0x28] sm:$0xff]
        %v1101 = vld [vmem:[#allocation10 + $0x30] sm:$0xff]
        %v1102 = vld [vmem:[#allocation10 + $0x38] sm:$0xff]
        %v1103 = vld [vmem:[#allocation10 + $0x40] sm:$0xff]
        %v1104 = vld [vmem:[#allocation10 + $0x48] sm:$0xff]
        %v1105 = vld [vmem:[#allocation10 + $0x50] sm:$0xff]
        %v1106 = vld [vmem:[#allocation10 + $0x58] sm:$0xff]
        %v1107 = vld [vmem:[#allocation10 + $0x60] sm:$0xff]
        %v1108 = vld [vmem:[#allocation10 + $0x68] sm:$0xff]
        %v1109 = vld [vmem:[#allocation10 + $0x70] sm:$0xff]
        %v1110 = vld [vmem:[#allocation10 + $0x78] sm:$0xff]
        %v1111 = vadd.f32 %v1095, %v1001
        %v1112 = vadd.f32 %v1096, %v1004
        %v1113 = vadd.f32 %v1097, %v1009
        %v1114 = vadd.f32 %v1098, %v1012
        %v1115 = vadd.f32 %v1099, %v1017
        %v1116 = vadd.f32 %v1100, %v1020
        %v1117 = vadd.f32 %v1101, %v1025
        %v1118 = vadd.f32 %v1102, %v1028
        %v1119 = vadd.f32 %v1103, %v1033
        %v1120 = vadd.f32 %v1104, %v1036
        %v1121 = vadd.f32 %v1105, %v1041
        %v1122 = vadd.f32 %v1106, %v1044
        %v1123 = vadd.f32 %v1107, %v1049
        %v1124 = vadd.f32 %v1108, %v1052
        %v1125 = vadd.f32 %v1109, %v1057
        %v1126 = vadd.f32 %v1110, %v1060
        %1127 = vst [vmem:[#allocation10] sm:$0xff] %v1111
        %1128 = vst [vmem:[#allocation10 + $0x8] sm:$0xff] %v1112
        %1129 = vst [vmem:[#allocation10 + $0x10] sm:$0xff] %v1113
        %1130 = vst [vmem:[#allocation10 + $0x18] sm:$0xff] %v1114
        %1131 = vst [vmem:[#allocation10 + $0x20] sm:$0xff] %v1115
        %1132 = vst [vmem:[#allocation10 + $0x28] sm:$0xff] %v1116
        %1133 = vst [vmem:[#allocation10 + $0x30] sm:$0xff] %v1117
        %1134 = vst [vmem:[#allocation10 + $0x38] sm:$0xff] %v1118
        %1135 = vst [vmem:[#allocation10 + $0x40] sm:$0xff] %v1119
        %1136 = vst [vmem:[#allocation10 + $0x48] sm:$0xff] %v1120
        %1137 = vst [vmem:[#allocation10 + $0x50] sm:$0xff] %v1121
        %1138 = vst [vmem:[#allocation10 + $0x58] sm:$0xff] %v1122
        %1139 = vst [vmem:[#allocation10 + $0x60] sm:$0xff] %v1123
        %1140 = vst [vmem:[#allocation10 + $0x68] sm:$0xff] %v1124
        %1141 = vst [vmem:[#allocation10 + $0x70] sm:$0xff] %v1125
        %1142 = vst [vmem:[#allocation10 + $0x78] sm:$0xff] %v1126
        %v1143 = vld [vmem:[#allocation11] sm:$0xff]
        %v1144 = vld [vmem:[#allocation11 + $0x8] sm:$0xff]
        %v1145 = vld [vmem:[#allocation11 + $0x10] sm:$0xff]
        %v1146 = vld [vmem:[#allocation11 + $0x18] sm:$0xff]
        %v1147 = vld [vmem:[#allocation11 + $0x20] sm:$0xff]
        %v1148 = vld [vmem:[#allocation11 + $0x28] sm:$0xff]
        %v1149 = vld [vmem:[#allocation11 + $0x30] sm:$0xff]
        %v1150 = vld [vmem:[#allocation11 + $0x38] sm:$0xff]
        %v1151 = vld [vmem:[#allocation11 + $0x40] sm:$0xff]
        %v1152 = vld [vmem:[#allocation11 + $0x48] sm:$0xff]
        %v1153 = vld [vmem:[#allocation11 + $0x50] sm:$0xff]
        %v1154 = vld [vmem:[#allocation11 + $0x58] sm:$0xff]
        %v1155 = vld [vmem:[#allocation11 + $0x60] sm:$0xff]
        %v1156 = vld [vmem:[#allocation11 + $0x68] sm:$0xff]
        %v1157 = vld [vmem:[#allocation11 + $0x70] sm:$0xff]
        %v1158 = vld [vmem:[#allocation11 + $0x78] sm:$0xff]
        %v1159 = vadd.f32 %v1143, %v926
        %v1160 = vadd.f32 %v1144, %v927
        %v1161 = vadd.f32 %v1145, %v928
        %v1162 = vadd.f32 %v1146, %v929
        %v1163 = vadd.f32 %v1147, %v930
        %v1164 = vadd.f32 %v1148, %v931
        %v1165 = vadd.f32 %v1149, %v932
        %v1166 = vadd.f32 %v1150, %v933
        %v1167 = vadd.f32 %v1151, %v934
        %v1168 = vadd.f32 %v1152, %v935
        %v1169 = vadd.f32 %v1153, %v936
        %v1170 = vadd.f32 %v1154, %v937
        %v1171 = vadd.f32 %v1155, %v938
        %v1172 = vadd.f32 %v1156, %v939
        %v1173 = vadd.f32 %v1157, %v940
        %v1174 = vadd.f32 %v1158, %v941
        %1175 = vst [vmem:[#allocation11] sm:$0xff] %v1159
        %1176 = vst [vmem:[#allocation11 + $0x8] sm:$0xff] %v1160
        %1177 = vst [vmem:[#allocation11 + $0x10] sm:$0xff] %v1161
        %1178 = vst [vmem:[#allocation11 + $0x18] sm:$0xff] %v1162
        %1179 = vst [vmem:[#allocation11 + $0x20] sm:$0xff] %v1163
        %1180 = vst [vmem:[#allocation11 + $0x28] sm:$0xff] %v1164
        %1181 = vst [vmem:[#allocation11 + $0x30] sm:$0xff] %v1165
        %1182 = vst [vmem:[#allocation11 + $0x38] sm:$0xff] %v1166
        %1183 = vst [vmem:[#allocation11 + $0x40] sm:$0xff] %v1167
        %1184 = vst [vmem:[#allocation11 + $0x48] sm:$0xff] %v1168
        %1185 = vst [vmem:[#allocation11 + $0x50] sm:$0xff] %v1169
        %1186 = vst [vmem:[#allocation11 + $0x58] sm:$0xff] %v1170
        %1187 = vst [vmem:[#allocation11 + $0x60] sm:$0xff] %v1171
        %1188 = vst [vmem:[#allocation11 + $0x68] sm:$0xff] %v1172
        %1189 = vst [vmem:[#allocation11 + $0x70] sm:$0xff] %v1173
        %1190 = vst [vmem:[#allocation11 + $0x78] sm:$0xff] %v1174
        // Predicated region
        $region63: #{tpu_custom_call.1} parent=35 // pred_check
          %p1191 = pneg %p132
        $region64: #{tpu_custom_call.1} parent=35 // pred_check_branch
          %1193 = sbr.rel (%p1191) target = $region66
        $region65: #{tpu_custom_call.1} parent=35 // pred_region
          %s1195 = ssub.s32 2048, 2048
          %1196 = vsyncadd [#allocation6], %s1195
          %s1197 = sshll.u32 [#allocation10], 4
          %s1198 = int_to_ptr.vmem [resolvable:$true] %s1197
          %1203 = dma.vmem_to_hbm [thread:$0]  %s1198, 2048, %s6, [#allocation6], 128, 128, 8
        $region66: #{tpu_custom_call.1} parent=35 // pred_fallthru
          _
        // Predicated region
        $region67: #{tpu_custom_call.1} parent=35 // pred_check
          %p1204 = pneg %p153
        $region68: #{tpu_custom_call.1} parent=35 // pred_check_branch
          %1206 = sbr.rel (%p1204) target = $region70
        $region69: #{tpu_custom_call.1} parent=35 // pred_region
          %s1208 = ssub.s32 2048, 2048
          %1209 = vsyncadd [#allocation12], %s1208
          %s1210 = sshll.u32 [#allocation11], 4
          %s1211 = int_to_ptr.vmem [resolvable:$true] %s1210
          %1216 = dma.vmem_to_hbm [thread:$0]  %s1211, 2048, %s7, [#allocation12], 128, 128, 8
        $region70: #{tpu_custom_call.1} parent=35 // pred_fallthru
          _
        // Predicated region
        $region71: #{tpu_custom_call.1} parent=35 // pred_check
          %p1217 = pneg %p132
        $region72: #{tpu_custom_call.1} parent=35 // pred_check_branch
          %1219 = sbr.rel (%p1217) target = $region74
        $region73: #{tpu_custom_call.1} parent=35 // pred_region
          %1220 = dma.done [#allocation6], 2048
        $region74: #{tpu_custom_call.1} parent=35 // pred_fallthru
          _
        // Predicated region
        $region75: #{tpu_custom_call.1} parent=35 // pred_check
          %p1221 = pneg %p153
        $region76: #{tpu_custom_call.1} parent=35 // pred_check_branch
          %1223 = sbr.rel (%p1221) target = $region78
        $region77: #{tpu_custom_call.1} parent=35 // pred_region
          %1224 = dma.done [#allocation12], 2048
        $region78: #{tpu_custom_call.1} parent=35 // pred_fallthru
          _
      $region36: #{tpu_custom_call.1} parent=5 // pred_fallthru
        _
      %p1225 = scmp.le.s32.totalorder 2, %s20
      // Predicated region
      $region79: #{tpu_custom_call.1} parent=5 // pred_check
        %p1226 = pneg %p1225
      $region80: #{tpu_custom_call.1} parent=5 // pred_check_branch
        %1228 = sbr.rel (%p1226) target = $region82
      $region81: #{tpu_custom_call.1} parent=5 // pred_region
        %s1229 = ssub.s32 %s20, 2
      $region82: #{tpu_custom_call.1} parent=5 // pred_fallthru
        _
    $region6: #{tpu_custom_call.1} parent=1 // loop_footer
      %s24 = sadd.s32 1, %s20
    $region7: #{tpu_custom_call.1} parent=1 // loop_footer_branch
      %19 = sbr.rel target = $region3
    $region8: #{tpu_custom_call.1} parent=1 // loop_exit
      _
    %1230 = vsyncpa [#allocation5], 1
    %s1231 = scalar_lea.sflag [#allocation5], 1
    %1232 = vsyncpa %s1231, 1
    %1233 = vsyncpa [#allocation8], 1
    %s1234 = scalar_lea.sflag [#allocation8], 1
    %1235 = vsyncpa %s1234, 1
    %1236 = vsyncpa [#allocation6], 1
    %s1237 = scalar_lea.sflag [#allocation6], 1
    %1238 = vsyncpa %s1237, 1
    %1239 = vsyncpa [#allocation12], 1

</llo_original>
